<compile_context>
chip_gen: v7x
topology: tpu7x:2x2x1
jax: 0.10.0
libtpu: 0.0.40
codegen_flags: <defaults>
</compile_context>

<pallas_src>
import jax
import jax.numpy as jnp
from jax.experimental import pallas as pl
from jax.experimental.pallas import tpu as pltpu

INPUT_CH = 3
GEO_FEAT_DIM = 15
HIDDEN_DIM = 64
NUM_LAYERS = 2
OUT_DIM = 1 + GEO_FEAT_DIM  # 16


def _sdf_mlp_kernel(x_ref, w1_ref, w2_ref, o_ref):
    # x_ref:  (tile_n, INPUT_CH)      f32
    # w1_ref: (INPUT_CH, HIDDEN_DIM)  bf16 (pre-transposed, pre-cast)
    # w2_ref: (HIDDEN_DIM, OUT_DIM)   bf16
    # o_ref:  (tile_n, OUT_DIM)       f32
    x = x_ref[...].astype(jnp.bfloat16)              # cheap VPU cast for the MXU
    h = jnp.dot(x, w1_ref[...], preferred_element_type=jnp.float32)
    h = jnp.maximum(h, 0.0)                          # ReLU in f32
    o_ref[...] = jnp.dot(h.astype(jnp.bfloat16), w2_ref[...],
                         preferred_element_type=jnp.float32).astype(o_ref.dtype)


def _round_up(a, b):
    return ((a + b - 1) // b) * b


def sdf_net_forward(x, w1, w2, *, return_geo=True, tile_n=4096):
    """SDFNet.forward.

    x:  [..., INPUT_CH] float32
    w1: [HIDDEN_DIM, INPUT_CH]  (PyTorch nn.Linear weight layout [out, in])
    w2: [OUT_DIM, HIDDEN_DIM]
    Returns [..., OUT_DIM] (return_geo=True) or [..., 1].
    """
    orig_shape = x.shape
    x2d = x.reshape(-1, INPUT_CH)
    n = x2d.shape[0]

    # Keep the block a multiple of 8 (sublane) and never wastefully larger
    # than the (rounded-up) number of rows.
    tile = max(8, min(tile_n, _round_up(n, 8)))
    grid = (pl.cdiv(n, tile),)

    # Pre-transpose to [in, out]; cast once to bf16 (tiny, grid-invariant).
    w1_t = w1.T.astype(jnp.bfloat16)  # (INPUT_CH, HIDDEN_DIM)
    w2_t = w2.T.astype(jnp.bfloat16)  # (HIDDEN_DIM, OUT_DIM)

    out = pl.pallas_call(
        _sdf_mlp_kernel,
        out_shape=jax.ShapeDtypeStruct((n, OUT_DIM), x.dtype),
        grid_spec=pltpu.PrefetchScalarGridSpec(
            num_scalar_prefetch=0,
            grid=grid,
            in_specs=[
                pl.BlockSpec((tile, INPUT_CH), lambda i: (i, 0)),
                pl.BlockSpec((INPUT_CH, HIDDEN_DIM), lambda i: (0, 0)),
                pl.BlockSpec((HIDDEN_DIM, OUT_DIM), lambda i: (0, 0)),
            ],
            out_specs=pl.BlockSpec((tile, OUT_DIM), lambda i: (i, 0)),
        ),
        compiler_params=pltpu.CompilerParams(
            dimension_semantics=("parallel",)),
    )(x2d, w1_t, w2_t)

    out = out.reshape(*orig_shape[:-1], OUT_DIM)
    if return_geo:
        return out
    return out[..., :1]


def init_params(key):
    """Deterministic init mirroring nn.Linear default (uniform in +-1/sqrt(fan_in))."""
    k1, k2 = jax.random.split(key)
    bound1 = 1.0 / jnp.sqrt(INPUT_CH)
    bound2 = 1.0 / jnp.sqrt(HIDDEN_DIM)
    w1 = jax.random.uniform(k1, (HIDDEN_DIM, INPUT_CH),
                            minval=-bound1, maxval=bound1, dtype=jnp.float32)
    w2 = jax.random.uniform(k2, (OUT_DIM, HIDDEN_DIM),
                            minval=-bound2, maxval=bound2, dtype=jnp.float32)
    return w1, w2


def _ref_forward_bf16(x, w1, w2):
    """Pure-JAX reference mirroring the kernel's bf16-matmul / f32-accumulate math."""
    xb = x.astype(jnp.bfloat16)
    w1b = w1.T.astype(jnp.bfloat16)
    w2b = w2.T.astype(jnp.bfloat16)
    h = jnp.dot(xb, w1b, preferred_element_type=jnp.float32)
    h = jnp.maximum(h, 0.0)
    return jnp.dot(h.astype(jnp.bfloat16), w2b, preferred_element_type=jnp.float32)


def _ref_forward_f32(x, w1, w2):
    return jnp.maximum(x @ w1.T, 0.0) @ w2.T


if __name__ == "__main__":
    key = jax.random.PRNGKey(0)
    kx1, kx2, kp = jax.random.split(key, 3)
    w1, w2 = init_params(kp)

    # Case 1: small batch of 3D points, single (ragged-free) block.
    N1 = 1000
    x1 = jax.random.normal(kx1, (N1, INPUT_CH), dtype=jnp.float32)
    out1 = jax.block_until_ready(sdf_net_forward(x1, w1, w2, return_geo=True))
    assert out1.shape == (N1, OUT_DIM), out1.shape
    ref1_bf16 = _ref_forward_bf16(x1, w1, w2)
    ref1_f32 = _ref_forward_f32(x1, w1, w2)
    assert jnp.allclose(out1, ref1_bf16, atol=2e-3, rtol=2e-3)
    assert jnp.allclose(out1, ref1_f32, atol=5e-2, rtol=5e-2)

    # Case 2: multiple grid steps + ragged last block (no host-side padding).
    N2 = 5000
    x2 = jax.random.normal(kx2, (N2, INPUT_CH), dtype=jnp.float32)
    out2 = jax.block_until_ready(
        sdf_net_forward(x2, w1, w2, return_geo=True, tile_n=2048))
    assert out2.shape == (N2, OUT_DIM), out2.shape
    ref2_bf16 = _ref_forward_bf16(x2, w1, w2)
    ref2_f32 = _ref_forward_f32(x2, w1, w2)
    assert jnp.allclose(out2, ref2_bf16, atol=2e-3, rtol=2e-3)
    assert jnp.allclose(out2, ref2_f32, atol=5e-2, rtol=5e-2)

    # return_geo=False path (SDF value only).
    sdf_only = jax.block_until_ready(
        sdf_net_forward(x1, w1, w2, return_geo=False))
    assert sdf_only.shape == (N1, 1)
    assert jnp.allclose(sdf_only, out1[..., :1])

    print("KERNEL_OK")
</pallas_src>

<mosaic_0001>
module attributes {stable_mosaic.version = 11 : i64} {
  func.func @_sdf_mlp_kernel(%arg0: i32, %arg1: memref<1000x3xf32, #tpu.memory_space<vmem>>, %arg2: memref<3x64xbf16, #tpu.memory_space<vmem>>, %arg3: memref<64x16xbf16, #tpu.memory_space<vmem>>, %arg4: memref<1000x16xf32, #tpu.memory_space<vmem>>) attributes {dimension_semantics = [#tpu.dimension_semantics<parallel>], iteration_bounds = array<i64: 1>, scalar_prefetch = 0 : i64, scratch_operands = 0 : i64, tpu.core_type = #tpu.core_type<tc>, window_params = [{transform_indices = @transform_0, window_bounds = array<i64: 1000, 3>}, {pipeline_mode = #tpu.pipeline_mode<synchronous>, transform_indices = @transform_1, window_bounds = array<i64: 3, 64>}, {pipeline_mode = #tpu.pipeline_mode<synchronous>, transform_indices = @transform_2, window_bounds = array<i64: 64, 16>}, {transform_indices = @transform_3, window_bounds = array<i64: 1000, 16>}]} {
    %c0 = arith.constant 0 : index
    %c0_0 = arith.constant 0 : index
    %0 = vector.load %arg1[%c0, %c0_0] : memref<1000x3xf32, #tpu.memory_space<vmem>>, vector<1000x3xf32>
    %1 = arith.truncf %0 : vector<1000x3xf32> to vector<1000x3xbf16>
    %c0_1 = arith.constant 0 : index
    %c0_2 = arith.constant 0 : index
    %2 = vector.load %arg2[%c0_1, %c0_2] : memref<3x64xbf16, #tpu.memory_space<vmem>>, vector<3x64xbf16>
    %cst = arith.constant dense<0.000000e+00> : vector<1000x64xf32>
    %3 = tpu.matmul %1, %2, %cst {dimension_numbers = #tpu.dot_dimension_numbers<[1], [0], [0], [1], [0, 0, 1, 1], [], []>} : vector<1000x3xbf16>, vector<3x64xbf16>, vector<1000x64xf32> -> vector<1000x64xf32>
    %cst_3 = arith.constant 0.000000e+00 : f32
    %4 = vector.broadcast %cst_3 : f32 to vector<1000x64xf32>
    %5 = arith.maximumf %3, %4 : vector<1000x64xf32>
    %6 = arith.truncf %5 : vector<1000x64xf32> to vector<1000x64xbf16>
    %c0_4 = arith.constant 0 : index
    %c0_5 = arith.constant 0 : index
    %7 = vector.load %arg3[%c0_4, %c0_5] : memref<64x16xbf16, #tpu.memory_space<vmem>>, vector<64x16xbf16>
    %cst_6 = arith.constant dense<0.000000e+00> : vector<1000x16xf32>
    %8 = tpu.matmul %6, %7, %cst_6 {dimension_numbers = #tpu.dot_dimension_numbers<[1], [0], [0], [1], [0, 0, 1, 1], [], []>} : vector<1000x64xbf16>, vector<64x16xbf16>, vector<1000x16xf32> -> vector<1000x16xf32>
    %c0_7 = arith.constant 0 : index
    %c0_8 = arith.constant 0 : index
    %9 = vector.load %arg4[%c0_7, %c0_8] : memref<1000x16xf32, #tpu.memory_space<vmem>>, vector<1000x16xf32>
    tpu.vector_store %arg4[%c0_7, %c0_8], %8 {strides = array<i32>} : memref<1000x16xf32, #tpu.memory_space<vmem>>, vector<1000x16xf32>,
    return
  }
  func.func @transform_0(%arg0: i32) -> (i32, i32) {
    %c0_i32 = arith.constant 0 : i32
    %c0_i32_0 = arith.constant 0 : i32
    return %arg0, %c0_i32 : i32, i32
  }
  func.func @transform_1(%arg0: i32) -> (i32, i32) {
    %c0_i32 = arith.constant 0 : i32
    %c0_i32_0 = arith.constant 0 : i32
    %c0_i32_1 = arith.constant 0 : i32
    return %c0_i32, %c0_i32_0 : i32, i32
  }
  func.func @transform_2(%arg0: i32) -> (i32, i32) {
    %c0_i32 = arith.constant 0 : i32
    %c0_i32_0 = arith.constant 0 : i32
    %c0_i32_1 = arith.constant 0 : i32
    return %c0_i32, %c0_i32_0 : i32, i32
  }
  func.func @transform_3(%arg0: i32) -> (i32, i32) {
    %c0_i32 = arith.constant 0 : i32
    %c0_i32_0 = arith.constant 0 : i32
    return %arg0, %c0_i32 : i32, i32
  }
}

</mosaic_0001>

<llo_original>
// kernel: tpu_custom_call.1
$region0: #{tpu_custom_call.1}
  #allocation0 [shape = 'u32[]', space=smem, size = 0x4, offset = 0x4, fixed_abs, tag = 'smem constant byte address 0x4 - core index']
  #allocation1 [shape = 'u32[144,128]{1,0:T(1,128)}', space=vmem, size = 0x12000, scoped, tag = 'internal scratch']
  %s0 = inlined_call_operand.vmem [shape: f32[1000,3], index: 0, kind: input, shape index: {}]
  %s1 = inlined_call_operand.vmem [shape: bf16[3,64], index: 1, kind: input, shape index: {}]
  %s2 = inlined_call_operand.vmem [shape: bf16[64,16], index: 2, kind: input, shape index: {}]
  %s3 = inlined_call_operand.vmem [shape: f32[1000,16], index: 3, kind: output, shape index: {}]
  %s4 = sld [smem:[#allocation0]]
  $region22: #{tpu_custom_call.1} parent=0
    _
  %s6 = ssub.s32 1, %s4
  %s7 = scalar_select 0, %s6, %s4
  // Predicated region
  $region2: #{tpu_custom_call.1} parent=0 // pred_check
    _
  $region3: #{tpu_custom_call.1} parent=0 // pred_check_branch
    %9 = sbr.rel (0) target = $region5
  $region4: #{tpu_custom_call.1} parent=0 // pred_region
    _
  $region5: #{tpu_custom_call.1} parent=0 // pred_fallthru
    _
  // Predicated region
  $region6: #{tpu_custom_call.1} parent=0 // pred_check
    _
  $region7: #{tpu_custom_call.1} parent=0 // pred_check_branch
    %11 = sbr.rel (0) target = $region9
  $region8: #{tpu_custom_call.1} parent=0 // pred_region
    _
  $region9: #{tpu_custom_call.1} parent=0 // pred_fallthru
    _
  // Predicated region
  $region10: #{tpu_custom_call.1} parent=0 // pred_check
    _
  $region11: #{tpu_custom_call.1} parent=0 // pred_check_branch
    %13 = sbr.rel (0) target = $region13
  $region12: #{tpu_custom_call.1} parent=0 // pred_region
    _
  $region13: #{tpu_custom_call.1} parent=0 // pred_fallthru
    _
  %v15 = vld [vmem:[%s0] sm:$0xff]
  %v16 = vld [vmem:[%s0 + $0x8] sm:$0xff]
  %v17 = vld [vmem:[%s0 + $0x10] sm:$0xff]
  %v18 = vld [vmem:[%s0 + $0x18] sm:$0xff]
  %v19 = vld [vmem:[%s0 + $0x20] sm:$0xff]
  %v20 = vld [vmem:[%s0 + $0x28] sm:$0xff]
  %v21 = vld [vmem:[%s0 + $0x30] sm:$0xff]
  %v22 = vld [vmem:[%s0 + $0x38] sm:$0xff]
  %v23 = vld [vmem:[%s0 + $0x40] sm:$0xff]
  %v24 = vld [vmem:[%s0 + $0x48] sm:$0xff]
  %v25 = vld [vmem:[%s0 + $0x50] sm:$0xff]
  %v26 = vld [vmem:[%s0 + $0x58] sm:$0xff]
  %v27 = vld [vmem:[%s0 + $0x60] sm:$0xff]
  %v28 = vld [vmem:[%s0 + $0x68] sm:$0xff]
  %v29 = vld [vmem:[%s0 + $0x70] sm:$0xff]
  %v30 = vld [vmem:[%s0 + $0x78] sm:$0xff]
  %v31 = vld [vmem:[%s0 + $0x80] sm:$0xff]
  %v32 = vld [vmem:[%s0 + $0x88] sm:$0xff]
  %v33 = vld [vmem:[%s0 + $0x90] sm:$0xff]
  %v34 = vld [vmem:[%s0 + $0x98] sm:$0xff]
  %v35 = vld [vmem:[%s0 + $0xa0] sm:$0xff]
  %v36 = vld [vmem:[%s0 + $0xa8] sm:$0xff]
  %v37 = vld [vmem:[%s0 + $0xb0] sm:$0xff]
  %v38 = vld [vmem:[%s0 + $0xb8] sm:$0xff]
  %v39 = vld [vmem:[%s0 + $0xc0] sm:$0xff]
  %v40 = vld [vmem:[%s0 + $0xc8] sm:$0xff]
  %v41 = vld [vmem:[%s0 + $0xd0] sm:$0xff]
  %v42 = vld [vmem:[%s0 + $0xd8] sm:$0xff]
  %v43 = vld [vmem:[%s0 + $0xe0] sm:$0xff]
  %v44 = vld [vmem:[%s0 + $0xe8] sm:$0xff]
  %v45 = vld [vmem:[%s0 + $0xf0] sm:$0xff]
  %v46 = vld [vmem:[%s0 + $0xf8] sm:$0xff]
  %v47 = vld [vmem:[%s0 + $0x100] sm:$0xff]
  %v48 = vld [vmem:[%s0 + $0x108] sm:$0xff]
  %v49 = vld [vmem:[%s0 + $0x110] sm:$0xff]
  %v50 = vld [vmem:[%s0 + $0x118] sm:$0xff]
  %v51 = vld [vmem:[%s0 + $0x120] sm:$0xff]
  %v52 = vld [vmem:[%s0 + $0x128] sm:$0xff]
  %v53 = vld [vmem:[%s0 + $0x130] sm:$0xff]
  %v54 = vld [vmem:[%s0 + $0x138] sm:$0xff]
  %v55 = vld [vmem:[%s0 + $0x140] sm:$0xff]
  %v56 = vld [vmem:[%s0 + $0x148] sm:$0xff]
  %v57 = vld [vmem:[%s0 + $0x150] sm:$0xff]
  %v58 = vld [vmem:[%s0 + $0x158] sm:$0xff]
  %v59 = vld [vmem:[%s0 + $0x160] sm:$0xff]
  %v60 = vld [vmem:[%s0 + $0x168] sm:$0xff]
  %v61 = vld [vmem:[%s0 + $0x170] sm:$0xff]
  %v62 = vld [vmem:[%s0 + $0x178] sm:$0xff]
  %v63 = vld [vmem:[%s0 + $0x180] sm:$0xff]
  %v64 = vld [vmem:[%s0 + $0x188] sm:$0xff]
  %v65 = vld [vmem:[%s0 + $0x190] sm:$0xff]
  %v66 = vld [vmem:[%s0 + $0x198] sm:$0xff]
  %v67 = vld [vmem:[%s0 + $0x1a0] sm:$0xff]
  %v68 = vld [vmem:[%s0 + $0x1a8] sm:$0xff]
  %v69 = vld [vmem:[%s0 + $0x1b0] sm:$0xff]
  %v70 = vld [vmem:[%s0 + $0x1b8] sm:$0xff]
  %v71 = vld [vmem:[%s0 + $0x1c0] sm:$0xff]
  %v72 = vld [vmem:[%s0 + $0x1c8] sm:$0xff]
  %v73 = vld [vmem:[%s0 + $0x1d0] sm:$0xff]
  %v74 = vld [vmem:[%s0 + $0x1d8] sm:$0xff]
  %v75 = vld [vmem:[%s0 + $0x1e0] sm:$0xff]
  %v76 = vld [vmem:[%s0 + $0x1e8] sm:$0xff]
  %v77 = vld [vmem:[%s0 + $0x1f0] sm:$0xff]
  %v78 = vld [vmem:[%s0 + $0x1f8] sm:$0xff]
  %v79 = vld [vmem:[%s0 + $0x200] sm:$0xff]
  %v80 = vld [vmem:[%s0 + $0x208] sm:$0xff]
  %v81 = vld [vmem:[%s0 + $0x210] sm:$0xff]
  %v82 = vld [vmem:[%s0 + $0x218] sm:$0xff]
  %v83 = vld [vmem:[%s0 + $0x220] sm:$0xff]
  %v84 = vld [vmem:[%s0 + $0x228] sm:$0xff]
  %v85 = vld [vmem:[%s0 + $0x230] sm:$0xff]
  %v86 = vld [vmem:[%s0 + $0x238] sm:$0xff]
  %v87 = vld [vmem:[%s0 + $0x240] sm:$0xff]
  %v88 = vld [vmem:[%s0 + $0x248] sm:$0xff]
  %v89 = vld [vmem:[%s0 + $0x250] sm:$0xff]
  %v90 = vld [vmem:[%s0 + $0x258] sm:$0xff]
  %v91 = vld [vmem:[%s0 + $0x260] sm:$0xff]
  %v92 = vld [vmem:[%s0 + $0x268] sm:$0xff]
  %v93 = vld [vmem:[%s0 + $0x270] sm:$0xff]
  %v94 = vld [vmem:[%s0 + $0x278] sm:$0xff]
  %v95 = vld [vmem:[%s0 + $0x280] sm:$0xff]
  %v96 = vld [vmem:[%s0 + $0x288] sm:$0xff]
  %v97 = vld [vmem:[%s0 + $0x290] sm:$0xff]
  %v98 = vld [vmem:[%s0 + $0x298] sm:$0xff]
  %v99 = vld [vmem:[%s0 + $0x2a0] sm:$0xff]
  %v100 = vld [vmem:[%s0 + $0x2a8] sm:$0xff]
  %v101 = vld [vmem:[%s0 + $0x2b0] sm:$0xff]
  %v102 = vld [vmem:[%s0 + $0x2b8] sm:$0xff]
  %v103 = vld [vmem:[%s0 + $0x2c0] sm:$0xff]
  %v104 = vld [vmem:[%s0 + $0x2c8] sm:$0xff]
  %v105 = vld [vmem:[%s0 + $0x2d0] sm:$0xff]
  %v106 = vld [vmem:[%s0 + $0x2d8] sm:$0xff]
  %v107 = vld [vmem:[%s0 + $0x2e0] sm:$0xff]
  %v108 = vld [vmem:[%s0 + $0x2e8] sm:$0xff]
  %v109 = vld [vmem:[%s0 + $0x2f0] sm:$0xff]
  %v110 = vld [vmem:[%s0 + $0x2f8] sm:$0xff]
  %v111 = vld [vmem:[%s0 + $0x300] sm:$0xff]
  %v112 = vld [vmem:[%s0 + $0x308] sm:$0xff]
  %v113 = vld [vmem:[%s0 + $0x310] sm:$0xff]
  %v114 = vld [vmem:[%s0 + $0x318] sm:$0xff]
  %v115 = vld [vmem:[%s0 + $0x320] sm:$0xff]
  %v116 = vld [vmem:[%s0 + $0x328] sm:$0xff]
  %v117 = vld [vmem:[%s0 + $0x330] sm:$0xff]
  %v118 = vld [vmem:[%s0 + $0x338] sm:$0xff]
  %v119 = vld [vmem:[%s0 + $0x340] sm:$0xff]
  %v120 = vld [vmem:[%s0 + $0x348] sm:$0xff]
  %v121 = vld [vmem:[%s0 + $0x350] sm:$0xff]
  %v122 = vld [vmem:[%s0 + $0x358] sm:$0xff]
  %v123 = vld [vmem:[%s0 + $0x360] sm:$0xff]
  %v124 = vld [vmem:[%s0 + $0x368] sm:$0xff]
  %v125 = vld [vmem:[%s0 + $0x370] sm:$0xff]
  %v126 = vld [vmem:[%s0 + $0x378] sm:$0xff]
  %v127 = vld [vmem:[%s0 + $0x380] sm:$0xff]
  %v128 = vld [vmem:[%s0 + $0x388] sm:$0xff]
  %v129 = vld [vmem:[%s0 + $0x390] sm:$0xff]
  %v130 = vld [vmem:[%s0 + $0x398] sm:$0xff]
  %v131 = vld [vmem:[%s0 + $0x3a0] sm:$0xff]
  %v132 = vld [vmem:[%s0 + $0x3a8] sm:$0xff]
  %v133 = vld [vmem:[%s0 + $0x3b0] sm:$0xff]
  %v134 = vld [vmem:[%s0 + $0x3b8] sm:$0xff]
  %v135 = vld [vmem:[%s0 + $0x3c0] sm:$0xff]
  %v136 = vld [vmem:[%s0 + $0x3c8] sm:$0xff]
  %v137 = vld [vmem:[%s0 + $0x3d0] sm:$0xff]
  %v138 = vld [vmem:[%s0 + $0x3d8] sm:$0xff]
  %v139 = vld [vmem:[%s0 + $0x3e0] sm:$0xff]
  %v140 = vpack.c.bf16 %v16, %v15
  %v141 = vpack.c.bf16 %v18, %v17
  %v142 = vpack.c.bf16 %v20, %v19
  %v143 = vpack.c.bf16 %v22, %v21
  %v144 = vpack.c.bf16 %v24, %v23
  %v145 = vpack.c.bf16 %v26, %v25
  %v146 = vpack.c.bf16 %v28, %v27
  %v147 = vpack.c.bf16 %v30, %v29
  %v148 = vpack.c.bf16 %v32, %v31
  %v149 = vpack.c.bf16 %v34, %v33
  %v150 = vpack.c.bf16 %v36, %v35
  %v151 = vpack.c.bf16 %v38, %v37
  %v152 = vpack.c.bf16 %v40, %v39
  %v153 = vpack.c.bf16 %v42, %v41
  %v154 = vpack.c.bf16 %v44, %v43
  %v155 = vpack.c.bf16 %v46, %v45
  %v156 = vpack.c.bf16 %v48, %v47
  %v157 = vpack.c.bf16 %v50, %v49
  %v158 = vpack.c.bf16 %v52, %v51
  %v159 = vpack.c.bf16 %v54, %v53
  %v160 = vpack.c.bf16 %v56, %v55
  %v161 = vpack.c.bf16 %v58, %v57
  %v162 = vpack.c.bf16 %v60, %v59
  %v163 = vpack.c.bf16 %v62, %v61
  %v164 = vpack.c.bf16 %v64, %v63
  %v165 = vpack.c.bf16 %v66, %v65
  %v166 = vpack.c.bf16 %v68, %v67
  %v167 = vpack.c.bf16 %v70, %v69
  %v168 = vpack.c.bf16 %v72, %v71
  %v169 = vpack.c.bf16 %v74, %v73
  %v170 = vpack.c.bf16 %v76, %v75
  %v171 = vpack.c.bf16 %v78, %v77
  %v172 = vpack.c.bf16 %v80, %v79
  %v173 = vpack.c.bf16 %v82, %v81
  %v174 = vpack.c.bf16 %v84, %v83
  %v175 = vpack.c.bf16 %v86, %v85
  %v176 = vpack.c.bf16 %v88, %v87
  %v177 = vpack.c.bf16 %v90, %v89
  %v178 = vpack.c.bf16 %v92, %v91
  %v179 = vpack.c.bf16 %v94, %v93
  %v180 = vpack.c.bf16 %v96, %v95
  %v181 = vpack.c.bf16 %v98, %v97
  %v182 = vpack.c.bf16 %v100, %v99
  %v183 = vpack.c.bf16 %v102, %v101
  %v184 = vpack.c.bf16 %v104, %v103
  %v185 = vpack.c.bf16 %v106, %v105
  %v186 = vpack.c.bf16 %v108, %v107
  %v187 = vpack.c.bf16 %v110, %v109
  %v188 = vpack.c.bf16 %v112, %v111
  %v189 = vpack.c.bf16 %v114, %v113
  %v190 = vpack.c.bf16 %v116, %v115
  %v191 = vpack.c.bf16 %v118, %v117
  %v192 = vpack.c.bf16 %v120, %v119
  %v193 = vpack.c.bf16 %v122, %v121
  %v194 = vpack.c.bf16 %v124, %v123
  %v195 = vpack.c.bf16 %v126, %v125
  %v196 = vpack.c.bf16 %v128, %v127
  %v197 = vpack.c.bf16 %v130, %v129
  %v198 = vpack.c.bf16 %v132, %v131
  %v199 = vpack.c.bf16 %v134, %v133
  %v200 = vpack.c.bf16 %v136, %v135
  %v201 = vpack.c.bf16 %v138, %v137
  %v202 = vpack.c.bf16 %v139, %v139
  %v203 = vld [vmem:[%s1] sm:$0x3]
  %vm204 = vcmask 23552
  %v206 = vsel %vm204, %v140, 0
  %v209 = vsel %vm204, %v141, 0
  %v212 = vsel %vm204, %v142, 0
  %v215 = vsel %vm204, %v143, 0
  %v218 = vsel %vm204, %v144, 0
  %v221 = vsel %vm204, %v145, 0
  %v224 = vsel %vm204, %v146, 0
  %v227 = vsel %vm204, %v147, 0
  %v230 = vsel %vm204, %v148, 0
  %v233 = vsel %vm204, %v149, 0
  %v236 = vsel %vm204, %v150, 0
  %v239 = vsel %vm204, %v151, 0
  %v242 = vsel %vm204, %v152, 0
  %v245 = vsel %vm204, %v153, 0
  %v248 = vsel %vm204, %v154, 0
  %v251 = vsel %vm204, %v155, 0
  %v254 = vsel %vm204, %v156, 0
  %v257 = vsel %vm204, %v157, 0
  %v260 = vsel %vm204, %v158, 0
  %v263 = vsel %vm204, %v159, 0
  %v266 = vsel %vm204, %v160, 0
  %v269 = vsel %vm204, %v161, 0
  %v272 = vsel %vm204, %v162, 0
  %v275 = vsel %vm204, %v163, 0
  %v278 = vsel %vm204, %v164, 0
  %v281 = vsel %vm204, %v165, 0
  %v284 = vsel %vm204, %v166, 0
  %v287 = vsel %vm204, %v167, 0
  %v290 = vsel %vm204, %v168, 0
  %v293 = vsel %vm204, %v169, 0
  %v296 = vsel %vm204, %v170, 0
  %v299 = vsel %vm204, %v171, 0
  %v302 = vsel %vm204, %v172, 0
  %v305 = vsel %vm204, %v173, 0
  %v308 = vsel %vm204, %v174, 0
  %v311 = vsel %vm204, %v175, 0
  %v314 = vsel %vm204, %v176, 0
  %v317 = vsel %vm204, %v177, 0
  %v320 = vsel %vm204, %v178, 0
  %v323 = vsel %vm204, %v179, 0
  %v326 = vsel %vm204, %v180, 0
  %v329 = vsel %vm204, %v181, 0
  %v332 = vsel %vm204, %v182, 0
  %v335 = vsel %vm204, %v183, 0
  %v338 = vsel %vm204, %v184, 0
  %v341 = vsel %vm204, %v185, 0
  %v344 = vsel %vm204, %v186, 0
  %v347 = vsel %vm204, %v187, 0
  %v350 = vsel %vm204, %v188, 0
  %v353 = vsel %vm204, %v189, 0
  %v356 = vsel %vm204, %v190, 0
  %v359 = vsel %vm204, %v191, 0
  %v362 = vsel %vm204, %v192, 0
  %v365 = vsel %vm204, %v193, 0
  %v368 = vsel %vm204, %v194, 0
  %v371 = vsel %vm204, %v195, 0
  %v374 = vsel %vm204, %v196, 0
  %v377 = vsel %vm204, %v197, 0
  %v380 = vsel %vm204, %v198, 0
  %v383 = vsel %vm204, %v199, 0
  %v386 = vsel %vm204, %v200, 0
  %v389 = vsel %vm204, %v201, 0
  %v392 = vsel %vm204, %v202, 0
  %vm394 = vcmask 1040384
  %vm395 = vcmask 1041408
  %v396 = vsel %vm394, 4294967295, 65535
  %v397 = vsel %vm395, %v396, 0
  %v399 = vand.u32 %v203, %v397
  %401 = vmatprep.subr.bf16.mxu0 0
  %402 = vmatpush1.bf16.msra.mxu0 %v399
  %403 = vmatprep.subr.bf16.mxu0 0
  %404 = vmatpush1.bf16.msra.mxu0 0
  %405 = vmatprep.subr.bf16.mxu0 0
  %406 = vmatpush1.bf16.msra.mxu0 0
  %407 = vmatprep.subr.bf16.mxu0 0
  %408 = vmatpush1.bf16.msra.mxu0 0
  %409 = vmatprep.subr.bf16.mxu0 0
  %410 = vmatpush1.bf16.msra.mxu0 0
  %411 = vmatprep.subr.bf16.mxu0 0
  %412 = vmatpush1.bf16.msra.mxu0 0
  %413 = vmatprep.subr.bf16.mxu0 0
  %414 = vmatpush1.bf16.msra.mxu0 0
  %415 = vmatprep.subr.bf16.mxu0 0
  %416 = vmatpush1.bf16.msra.mxu0 0
  %417 = vmatprep.subr.bf16.mxu0 0
  %418 = vmatpush1.bf16.msra.mxu0 0
  %419 = vmatprep.subr.bf16.mxu0 0
  %420 = vmatpush1.bf16.msra.mxu0 0
  %421 = vmatprep.subr.bf16.mxu0 0
  %422 = vmatpush1.bf16.msra.mxu0 0
  %423 = vmatprep.subr.bf16.mxu0 0
  %424 = vmatpush1.bf16.msra.mxu0 0
  %425 = vmatprep.subr.bf16.mxu0 0
  %426 = vmatpush1.bf16.msra.mxu0 0
  %427 = vmatprep.subr.bf16.mxu0 0
  %428 = vmatpush1.bf16.msra.mxu0 0
  %429 = vmatprep.subr.bf16.mxu0 0
  %430 = vmatpush1.bf16.msra.mxu0 0
  %431 = vmatprep.subr.bf16.mxu0 0
  %432 = vmatpush1.bf16.msra.mxu0 0
  %433 = vmatprep.mubr.bf16.mxu0 0
  %434 = vmatmul.mubr.bf16.gmra.mrb[0].mxu0 %v206
  %v435 = vpop.f32.mrb[0].mxu0
  %v436 = vadd.f32 0.0, %v435
  %v437 = vpop.f32.mrb[0].mxu0
  %v438 = vpop.f32.mrb[0].mxu0
  %v439 = vadd.f32 0.0, %v438
  %v440 = vpop.f32.mrb[0].mxu0
  %441 = vmatprep.mubr.bf16.mxu0 0
  %442 = vmatmul.mubr.bf16.gmra.mrb[0].mxu0 %v209
  %v443 = vpop.f32.mrb[0].mxu0
  %v444 = vadd.f32 0.0, %v443
  %v445 = vpop.f32.mrb[0].mxu0
  %v446 = vpop.f32.mrb[0].mxu0
  %v447 = vadd.f32 0.0, %v446
  %v448 = vpop.f32.mrb[0].mxu0
  %449 = vmatprep.mubr.bf16.mxu0 0
  %450 = vmatmul.mubr.bf16.gmra.mrb[0].mxu0 %v212
  %v451 = vpop.f32.mrb[0].mxu0
  %v452 = vadd.f32 0.0, %v451
  %v453 = vpop.f32.mrb[0].mxu0
  %v454 = vpop.f32.mrb[0].mxu0
  %v455 = vadd.f32 0.0, %v454
  %v456 = vpop.f32.mrb[0].mxu0
  %457 = vmatprep.mubr.bf16.mxu0 0
  %458 = vmatmul.mubr.bf16.gmra.mrb[0].mxu0 %v215
  %v459 = vpop.f32.mrb[0].mxu0
  %v460 = vadd.f32 0.0, %v459
  %v461 = vpop.f32.mrb[0].mxu0
  %v462 = vpop.f32.mrb[0].mxu0
  %v463 = vadd.f32 0.0, %v462
  %v464 = vpop.f32.mrb[0].mxu0
  %465 = vmatprep.mubr.bf16.mxu0 0
  %466 = vmatmul.mubr.bf16.gmra.mrb[0].mxu0 %v218
  %v467 = vpop.f32.mrb[0].mxu0
  %v468 = vadd.f32 0.0, %v467
  %v469 = vpop.f32.mrb[0].mxu0
  %v470 = vpop.f32.mrb[0].mxu0
  %v471 = vadd.f32 0.0, %v470
  %v472 = vpop.f32.mrb[0].mxu0
  %473 = vmatprep.mubr.bf16.mxu0 0
  %474 = vmatmul.mubr.bf16.gmra.mrb[0].mxu0 %v221
  %v475 = vpop.f32.mrb[0].mxu0
  %v476 = vadd.f32 0.0, %v475
  %v477 = vpop.f32.mrb[0].mxu0
  %v478 = vpop.f32.mrb[0].mxu0
  %v479 = vadd.f32 0.0, %v478
  %v480 = vpop.f32.mrb[0].mxu0
  %481 = vmatprep.mubr.bf16.mxu0 0
  %482 = vmatmul.mubr.bf16.gmra.mrb[0].mxu0 %v224
  %v483 = vpop.f32.mrb[0].mxu0
  %v484 = vadd.f32 0.0, %v483
  %v485 = vpop.f32.mrb[0].mxu0
  %v486 = vpop.f32.mrb[0].mxu0
  %v487 = vadd.f32 0.0, %v486
  %v488 = vpop.f32.mrb[0].mxu0
  %489 = vmatprep.mubr.bf16.mxu0 0
  %490 = vmatmul.mubr.bf16.gmra.mrb[0].mxu0 %v227
  %v491 = vpop.f32.mrb[0].mxu0
  %v492 = vadd.f32 0.0, %v491
  %v493 = vpop.f32.mrb[0].mxu0
  %v494 = vpop.f32.mrb[0].mxu0
  %v495 = vadd.f32 0.0, %v494
  %v496 = vpop.f32.mrb[0].mxu0
  %497 = vmatprep.mubr.bf16.mxu0 0
  %498 = vmatmul.mubr.bf16.gmra.mrb[0].mxu0 %v230
  %v499 = vpop.f32.mrb[0].mxu0
  %v500 = vadd.f32 0.0, %v499
  %v501 = vpop.f32.mrb[0].mxu0
  %v502 = vpop.f32.mrb[0].mxu0
  %v503 = vadd.f32 0.0, %v502
  %v504 = vpop.f32.mrb[0].mxu0
  %505 = vmatprep.mubr.bf16.mxu0 0
  %506 = vmatmul.mubr.bf16.gmra.mrb[0].mxu0 %v233
  %v507 = vpop.f32.mrb[0].mxu0
  %v508 = vadd.f32 0.0, %v507
  %v509 = vpop.f32.mrb[0].mxu0
  %v510 = vpop.f32.mrb[0].mxu0
  %v511 = vadd.f32 0.0, %v510
  %v512 = vpop.f32.mrb[0].mxu0
  %513 = vmatprep.mubr.bf16.mxu0 0
  %514 = vmatmul.mubr.bf16.gmra.mrb[0].mxu0 %v236
  %v515 = vpop.f32.mrb[0].mxu0
  %v516 = vadd.f32 0.0, %v515
  %v517 = vpop.f32.mrb[0].mxu0
  %v518 = vpop.f32.mrb[0].mxu0
  %v519 = vadd.f32 0.0, %v518
  %v520 = vpop.f32.mrb[0].mxu0
  %521 = vmatprep.mubr.bf16.mxu0 0
  %522 = vmatmul.mubr.bf16.gmra.mrb[0].mxu0 %v239
  %v523 = vpop.f32.mrb[0].mxu0
  %v524 = vadd.f32 0.0, %v523
  %v525 = vpop.f32.mrb[0].mxu0
  %v526 = vpop.f32.mrb[0].mxu0
  %v527 = vadd.f32 0.0, %v526
  %v528 = vpop.f32.mrb[0].mxu0
  %529 = vmatprep.mubr.bf16.mxu0 0
  %530 = vmatmul.mubr.bf16.gmra.mrb[0].mxu0 %v242
  %v531 = vpop.f32.mrb[0].mxu0
  %v532 = vadd.f32 0.0, %v531
  %v533 = vpop.f32.mrb[0].mxu0
  %v534 = vpop.f32.mrb[0].mxu0
  %v535 = vadd.f32 0.0, %v534
  %v536 = vpop.f32.mrb[0].mxu0
  %537 = vmatprep.mubr.bf16.mxu0 0
  %538 = vmatmul.mubr.bf16.gmra.mrb[0].mxu0 %v245
  %v539 = vpop.f32.mrb[0].mxu0
  %v540 = vadd.f32 0.0, %v539
  %v541 = vpop.f32.mrb[0].mxu0
  %v542 = vpop.f32.mrb[0].mxu0
  %v543 = vadd.f32 0.0, %v542
  %v544 = vpop.f32.mrb[0].mxu0
  %545 = vmatprep.mubr.bf16.mxu0 0
  %546 = vmatmul.mubr.bf16.gmra.mrb[0].mxu0 %v248
  %v547 = vpop.f32.mrb[0].mxu0
  %v548 = vadd.f32 0.0, %v547
  %v549 = vpop.f32.mrb[0].mxu0
  %v550 = vpop.f32.mrb[0].mxu0
  %v551 = vadd.f32 0.0, %v550
  %v552 = vpop.f32.mrb[0].mxu0
  %553 = vmatprep.mubr.bf16.mxu0 0
  %554 = vmatmul.mubr.bf16.gmra.mrb[0].mxu0 %v251
  %v555 = vpop.f32.mrb[0].mxu0
  %v556 = vadd.f32 0.0, %v555
  %v557 = vpop.f32.mrb[0].mxu0
  %v558 = vpop.f32.mrb[0].mxu0
  %v559 = vadd.f32 0.0, %v558
  %v560 = vpop.f32.mrb[0].mxu0
  %561 = vmatprep.mubr.bf16.mxu0 0
  %562 = vmatmul.mubr.bf16.gmra.mrb[0].mxu0 %v254
  %v563 = vpop.f32.mrb[0].mxu0
  %v564 = vadd.f32 0.0, %v563
  %v565 = vpop.f32.mrb[0].mxu0
  %v566 = vpop.f32.mrb[0].mxu0
  %v567 = vadd.f32 0.0, %v566
  %v568 = vpop.f32.mrb[0].mxu0
  %569 = vmatprep.mubr.bf16.mxu0 0
  %570 = vmatmul.mubr.bf16.gmra.mrb[0].mxu0 %v257
  %v571 = vpop.f32.mrb[0].mxu0
  %v572 = vadd.f32 0.0, %v571
  %v573 = vpop.f32.mrb[0].mxu0
  %v574 = vpop.f32.mrb[0].mxu0
  %v575 = vadd.f32 0.0, %v574
  %v576 = vpop.f32.mrb[0].mxu0
  %577 = vmatprep.mubr.bf16.mxu0 0
  %578 = vmatmul.mubr.bf16.gmra.mrb[0].mxu0 %v260
  %v579 = vpop.f32.mrb[0].mxu0
  %v580 = vadd.f32 0.0, %v579
  %v581 = vpop.f32.mrb[0].mxu0
  %v582 = vpop.f32.mrb[0].mxu0
  %v583 = vadd.f32 0.0, %v582
  %v584 = vpop.f32.mrb[0].mxu0
  %585 = vmatprep.mubr.bf16.mxu0 0
  %586 = vmatmul.mubr.bf16.gmra.mrb[0].mxu0 %v263
  %v587 = vpop.f32.mrb[0].mxu0
  %v588 = vadd.f32 0.0, %v587
  %v589 = vpop.f32.mrb[0].mxu0
  %v590 = vpop.f32.mrb[0].mxu0
  %v591 = vadd.f32 0.0, %v590
  %v592 = vpop.f32.mrb[0].mxu0
  %593 = vmatprep.mubr.bf16.mxu0 0
  %594 = vmatmul.mubr.bf16.gmra.mrb[0].mxu0 %v266
  %v595 = vpop.f32.mrb[0].mxu0
  %v596 = vadd.f32 0.0, %v595
  %v597 = vpop.f32.mrb[0].mxu0
  %v598 = vpop.f32.mrb[0].mxu0
  %v599 = vadd.f32 0.0, %v598
  %v600 = vpop.f32.mrb[0].mxu0
  %601 = vmatprep.mubr.bf16.mxu0 0
  %602 = vmatmul.mubr.bf16.gmra.mrb[0].mxu0 %v269
  %v603 = vpop.f32.mrb[0].mxu0
  %v604 = vadd.f32 0.0, %v603
  %v605 = vpop.f32.mrb[0].mxu0
  %v606 = vpop.f32.mrb[0].mxu0
  %v607 = vadd.f32 0.0, %v606
  %v608 = vpop.f32.mrb[0].mxu0
  %609 = vmatprep.mubr.bf16.mxu0 0
  %610 = vmatmul.mubr.bf16.gmra.mrb[0].mxu0 %v272
  %v611 = vpop.f32.mrb[0].mxu0
  %v612 = vadd.f32 0.0, %v611
  %v613 = vpop.f32.mrb[0].mxu0
  %v614 = vpop.f32.mrb[0].mxu0
  %v615 = vadd.f32 0.0, %v614
  %v616 = vpop.f32.mrb[0].mxu0
  %617 = vmatprep.mubr.bf16.mxu0 0
  %618 = vmatmul.mubr.bf16.gmra.mrb[0].mxu0 %v275
  %v619 = vpop.f32.mrb[0].mxu0
  %v620 = vadd.f32 0.0, %v619
  %v621 = vpop.f32.mrb[0].mxu0
  %v622 = vpop.f32.mrb[0].mxu0
  %v623 = vadd.f32 0.0, %v622
  %v624 = vpop.f32.mrb[0].mxu0
  %625 = vmatprep.mubr.bf16.mxu0 0
  %626 = vmatmul.mubr.bf16.gmra.mrb[0].mxu0 %v278
  %v627 = vpop.f32.mrb[0].mxu0
  %v628 = vadd.f32 0.0, %v627
  %v629 = vpop.f32.mrb[0].mxu0
  %v630 = vpop.f32.mrb[0].mxu0
  %v631 = vadd.f32 0.0, %v630
  %v632 = vpop.f32.mrb[0].mxu0
  %633 = vmatprep.mubr.bf16.mxu0 0
  %634 = vmatmul.mubr.bf16.gmra.mrb[0].mxu0 %v281
  %v635 = vpop.f32.mrb[0].mxu0
  %v636 = vadd.f32 0.0, %v635
  %v637 = vpop.f32.mrb[0].mxu0
  %v638 = vpop.f32.mrb[0].mxu0
  %v639 = vadd.f32 0.0, %v638
  %v640 = vpop.f32.mrb[0].mxu0
  %641 = vmatprep.mubr.bf16.mxu0 0
  %642 = vmatmul.mubr.bf16.gmra.mrb[0].mxu0 %v284
  %v643 = vpop.f32.mrb[0].mxu0
  %v644 = vadd.f32 0.0, %v643
  %v645 = vpop.f32.mrb[0].mxu0
  %v646 = vpop.f32.mrb[0].mxu0
  %v647 = vadd.f32 0.0, %v646
  %v648 = vpop.f32.mrb[0].mxu0
  %649 = vmatprep.mubr.bf16.mxu0 0
  %650 = vmatmul.mubr.bf16.gmra.mrb[0].mxu0 %v287
  %v651 = vpop.f32.mrb[0].mxu0
  %v652 = vadd.f32 0.0, %v651
  %v653 = vpop.f32.mrb[0].mxu0
  %v654 = vpop.f32.mrb[0].mxu0
  %v655 = vadd.f32 0.0, %v654
  %v656 = vpop.f32.mrb[0].mxu0
  %657 = vmatprep.mubr.bf16.mxu0 0
  %658 = vmatmul.mubr.bf16.gmra.mrb[0].mxu0 %v290
  %v659 = vpop.f32.mrb[0].mxu0
  %v660 = vadd.f32 0.0, %v659
  %v661 = vpop.f32.mrb[0].mxu0
  %v662 = vpop.f32.mrb[0].mxu0
  %v663 = vadd.f32 0.0, %v662
  %v664 = vpop.f32.mrb[0].mxu0
  %665 = vmatprep.mubr.bf16.mxu0 0
  %666 = vmatmul.mubr.bf16.gmra.mrb[0].mxu0 %v293
  %v667 = vpop.f32.mrb[0].mxu0
  %v668 = vadd.f32 0.0, %v667
  %v669 = vpop.f32.mrb[0].mxu0
  %v670 = vpop.f32.mrb[0].mxu0
  %v671 = vadd.f32 0.0, %v670
  %v672 = vpop.f32.mrb[0].mxu0
  %673 = vmatprep.mubr.bf16.mxu0 0
  %674 = vmatmul.mubr.bf16.gmra.mrb[0].mxu0 %v296
  %v675 = vpop.f32.mrb[0].mxu0
  %v676 = vadd.f32 0.0, %v675
  %v677 = vpop.f32.mrb[0].mxu0
  %v678 = vpop.f32.mrb[0].mxu0
  %v679 = vadd.f32 0.0, %v678
  %v680 = vpop.f32.mrb[0].mxu0
  %681 = vmatprep.mubr.bf16.mxu0 0
  %682 = vmatmul.mubr.bf16.gmra.mrb[0].mxu0 %v299
  %v683 = vpop.f32.mrb[0].mxu0
  %v684 = vadd.f32 0.0, %v683
  %v685 = vpop.f32.mrb[0].mxu0
  %v686 = vpop.f32.mrb[0].mxu0
  %v687 = vadd.f32 0.0, %v686
  %v688 = vpop.f32.mrb[0].mxu0
  %689 = vmatprep.mubr.bf16.mxu0 0
  %690 = vmatmul.mubr.bf16.gmra.mrb[0].mxu0 %v302
  %v691 = vpop.f32.mrb[0].mxu0
  %v692 = vadd.f32 0.0, %v691
  %v693 = vpop.f32.mrb[0].mxu0
  %v694 = vpop.f32.mrb[0].mxu0
  %v695 = vadd.f32 0.0, %v694
  %v696 = vpop.f32.mrb[0].mxu0
  %697 = vmatprep.mubr.bf16.mxu0 0
  %698 = vmatmul.mubr.bf16.gmra.mrb[0].mxu0 %v305
  %v699 = vpop.f32.mrb[0].mxu0
  %v700 = vadd.f32 0.0, %v699
  %v701 = vpop.f32.mrb[0].mxu0
  %v702 = vpop.f32.mrb[0].mxu0
  %v703 = vadd.f32 0.0, %v702
  %v704 = vpop.f32.mrb[0].mxu0
  %705 = vmatprep.mubr.bf16.mxu0 0
  %706 = vmatmul.mubr.bf16.gmra.mrb[0].mxu0 %v308
  %v707 = vpop.f32.mrb[0].mxu0
  %v708 = vadd.f32 0.0, %v707
  %v709 = vpop.f32.mrb[0].mxu0
  %v710 = vpop.f32.mrb[0].mxu0
  %v711 = vadd.f32 0.0, %v710
  %v712 = vpop.f32.mrb[0].mxu0
  %713 = vmatprep.mubr.bf16.mxu0 0
  %714 = vmatmul.mubr.bf16.gmra.mrb[0].mxu0 %v311
  %v715 = vpop.f32.mrb[0].mxu0
  %v716 = vadd.f32 0.0, %v715
  %v717 = vpop.f32.mrb[0].mxu0
  %v718 = vpop.f32.mrb[0].mxu0
  %v719 = vadd.f32 0.0, %v718
  %v720 = vpop.f32.mrb[0].mxu0
  %721 = vmatprep.mubr.bf16.mxu0 0
  %722 = vmatmul.mubr.bf16.gmra.mrb[0].mxu0 %v314
  %v723 = vpop.f32.mrb[0].mxu0
  %v724 = vadd.f32 0.0, %v723
  %v725 = vpop.f32.mrb[0].mxu0
  %v726 = vpop.f32.mrb[0].mxu0
  %v727 = vadd.f32 0.0, %v726
  %v728 = vpop.f32.mrb[0].mxu0
  %729 = vmatprep.mubr.bf16.mxu0 0
  %730 = vmatmul.mubr.bf16.gmra.mrb[0].mxu0 %v317
  %v731 = vpop.f32.mrb[0].mxu0
  %v732 = vadd.f32 0.0, %v731
  %v733 = vpop.f32.mrb[0].mxu0
  %v734 = vpop.f32.mrb[0].mxu0
  %v735 = vadd.f32 0.0, %v734
  %v736 = vpop.f32.mrb[0].mxu0
  %737 = vmatprep.mubr.bf16.mxu0 0
  %738 = vmatmul.mubr.bf16.gmra.mrb[0].mxu0 %v320
  %v739 = vpop.f32.mrb[0].mxu0
  %v740 = vadd.f32 0.0, %v739
  %v741 = vpop.f32.mrb[0].mxu0
  %v742 = vpop.f32.mrb[0].mxu0
  %v743 = vadd.f32 0.0, %v742
  %v744 = vpop.f32.mrb[0].mxu0
  %745 = vmatprep.mubr.bf16.mxu0 0
  %746 = vmatmul.mubr.bf16.gmra.mrb[0].mxu0 %v323
  %v747 = vpop.f32.mrb[0].mxu0
  %v748 = vadd.f32 0.0, %v747
  %v749 = vpop.f32.mrb[0].mxu0
  %v750 = vpop.f32.mrb[0].mxu0
  %v751 = vadd.f32 0.0, %v750
  %v752 = vpop.f32.mrb[0].mxu0
  %753 = vmatprep.mubr.bf16.mxu0 0
  %754 = vmatmul.mubr.bf16.gmra.mrb[0].mxu0 %v326
  %v755 = vpop.f32.mrb[0].mxu0
  %v756 = vadd.f32 0.0, %v755
  %v757 = vpop.f32.mrb[0].mxu0
  %v758 = vpop.f32.mrb[0].mxu0
  %v759 = vadd.f32 0.0, %v758
  %v760 = vpop.f32.mrb[0].mxu0
  %761 = vmatprep.mubr.bf16.mxu0 0
  %762 = vmatmul.mubr.bf16.gmra.mrb[0].mxu0 %v329
  %v763 = vpop.f32.mrb[0].mxu0
  %v764 = vadd.f32 0.0, %v763
  %v765 = vpop.f32.mrb[0].mxu0
  %v766 = vpop.f32.mrb[0].mxu0
  %v767 = vadd.f32 0.0, %v766
  %v768 = vpop.f32.mrb[0].mxu0
  %769 = vmatprep.mubr.bf16.mxu0 0
  %770 = vmatmul.mubr.bf16.gmra.mrb[0].mxu0 %v332
  %v771 = vpop.f32.mrb[0].mxu0
  %v772 = vadd.f32 0.0, %v771
  %v773 = vpop.f32.mrb[0].mxu0
  %v774 = vpop.f32.mrb[0].mxu0
  %v775 = vadd.f32 0.0, %v774
  %v776 = vpop.f32.mrb[0].mxu0
  %777 = vmatprep.mubr.bf16.mxu0 0
  %778 = vmatmul.mubr.bf16.gmra.mrb[0].mxu0 %v335
  %v779 = vpop.f32.mrb[0].mxu0
  %v780 = vadd.f32 0.0, %v779
  %v781 = vpop.f32.mrb[0].mxu0
  %v782 = vpop.f32.mrb[0].mxu0
  %v783 = vadd.f32 0.0, %v782
  %v784 = vpop.f32.mrb[0].mxu0
  %785 = vmatprep.mubr.bf16.mxu0 0
  %786 = vmatmul.mubr.bf16.gmra.mrb[0].mxu0 %v338
  %v787 = vpop.f32.mrb[0].mxu0
  %v788 = vadd.f32 0.0, %v787
  %v789 = vpop.f32.mrb[0].mxu0
  %v790 = vpop.f32.mrb[0].mxu0
  %v791 = vadd.f32 0.0, %v790
  %v792 = vpop.f32.mrb[0].mxu0
  %793 = vmatprep.mubr.bf16.mxu0 0
  %794 = vmatmul.mubr.bf16.gmra.mrb[0].mxu0 %v341
  %v795 = vpop.f32.mrb[0].mxu0
  %v796 = vadd.f32 0.0, %v795
  %v797 = vpop.f32.mrb[0].mxu0
  %v798 = vpop.f32.mrb[0].mxu0
  %v799 = vadd.f32 0.0, %v798
  %v800 = vpop.f32.mrb[0].mxu0
  %801 = vmatprep.mubr.bf16.mxu0 0
  %802 = vmatmul.mubr.bf16.gmra.mrb[0].mxu0 %v344
  %v803 = vpop.f32.mrb[0].mxu0
  %v804 = vadd.f32 0.0, %v803
  %v805 = vpop.f32.mrb[0].mxu0
  %v806 = vpop.f32.mrb[0].mxu0
  %v807 = vadd.f32 0.0, %v806
  %v808 = vpop.f32.mrb[0].mxu0
  %809 = vmatprep.mubr.bf16.mxu0 0
  %810 = vmatmul.mubr.bf16.gmra.mrb[0].mxu0 %v347
  %v811 = vpop.f32.mrb[0].mxu0
  %v812 = vadd.f32 0.0, %v811
  %v813 = vpop.f32.mrb[0].mxu0
  %v814 = vpop.f32.mrb[0].mxu0
  %v815 = vadd.f32 0.0, %v814
  %v816 = vpop.f32.mrb[0].mxu0
  %817 = vmatprep.mubr.bf16.mxu0 0
  %818 = vmatmul.mubr.bf16.gmra.mrb[0].mxu0 %v350
  %v819 = vpop.f32.mrb[0].mxu0
  %v820 = vadd.f32 0.0, %v819
  %v821 = vpop.f32.mrb[0].mxu0
  %v822 = vpop.f32.mrb[0].mxu0
  %v823 = vadd.f32 0.0, %v822
  %v824 = vpop.f32.mrb[0].mxu0
  %825 = vmatprep.mubr.bf16.mxu0 0
  %826 = vmatmul.mubr.bf16.gmra.mrb[0].mxu0 %v353
  %v827 = vpop.f32.mrb[0].mxu0
  %v828 = vadd.f32 0.0, %v827
  %v829 = vpop.f32.mrb[0].mxu0
  %v830 = vpop.f32.mrb[0].mxu0
  %v831 = vadd.f32 0.0, %v830
  %v832 = vpop.f32.mrb[0].mxu0
  %833 = vmatprep.mubr.bf16.mxu0 0
  %834 = vmatmul.mubr.bf16.gmra.mrb[0].mxu0 %v356
  %v835 = vpop.f32.mrb[0].mxu0
  %v836 = vadd.f32 0.0, %v835
  %v837 = vpop.f32.mrb[0].mxu0
  %v838 = vpop.f32.mrb[0].mxu0
  %v839 = vadd.f32 0.0, %v838
  %v840 = vpop.f32.mrb[0].mxu0
  %841 = vmatprep.mubr.bf16.mxu0 0
  %842 = vmatmul.mubr.bf16.gmra.mrb[0].mxu0 %v359
  %v843 = vpop.f32.mrb[0].mxu0
  %v844 = vadd.f32 0.0, %v843
  %v845 = vpop.f32.mrb[0].mxu0
  %v846 = vpop.f32.mrb[0].mxu0
  %v847 = vadd.f32 0.0, %v846
  %v848 = vpop.f32.mrb[0].mxu0
  %849 = vmatprep.mubr.bf16.mxu0 0
  %850 = vmatmul.mubr.bf16.gmra.mrb[0].mxu0 %v362
  %v851 = vpop.f32.mrb[0].mxu0
  %v852 = vadd.f32 0.0, %v851
  %v853 = vpop.f32.mrb[0].mxu0
  %v854 = vpop.f32.mrb[0].mxu0
  %v855 = vadd.f32 0.0, %v854
  %v856 = vpop.f32.mrb[0].mxu0
  %857 = vmatprep.mubr.bf16.mxu0 0
  %858 = vmatmul.mubr.bf16.gmra.mrb[0].mxu0 %v365
  %v859 = vpop.f32.mrb[0].mxu0
  %v860 = vadd.f32 0.0, %v859
  %v861 = vpop.f32.mrb[0].mxu0
  %v862 = vpop.f32.mrb[0].mxu0
  %v863 = vadd.f32 0.0, %v862
  %v864 = vpop.f32.mrb[0].mxu0
  %865 = vmatprep.mubr.bf16.mxu0 0
  %866 = vmatmul.mubr.bf16.gmra.mrb[0].mxu0 %v368
  %v867 = vpop.f32.mrb[0].mxu0
  %v868 = vadd.f32 0.0, %v867
  %v869 = vpop.f32.mrb[0].mxu0
  %v870 = vpop.f32.mrb[0].mxu0
  %v871 = vadd.f32 0.0, %v870
  %v872 = vpop.f32.mrb[0].mxu0
  %873 = vmatprep.mubr.bf16.mxu0 0
  %874 = vmatmul.mubr.bf16.gmra.mrb[0].mxu0 %v371
  %v875 = vpop.f32.mrb[0].mxu0
  %v876 = vadd.f32 0.0, %v875
  %v877 = vpop.f32.mrb[0].mxu0
  %v878 = vpop.f32.mrb[0].mxu0
  %v879 = vadd.f32 0.0, %v878
  %v880 = vpop.f32.mrb[0].mxu0
  %881 = vmatprep.mubr.bf16.mxu0 0
  %882 = vmatmul.mubr.bf16.gmra.mrb[0].mxu0 %v374
  %v883 = vpop.f32.mrb[0].mxu0
  %v884 = vadd.f32 0.0, %v883
  %v885 = vpop.f32.mrb[0].mxu0
  %v886 = vpop.f32.mrb[0].mxu0
  %v887 = vadd.f32 0.0, %v886
  %v888 = vpop.f32.mrb[0].mxu0
  %889 = vmatprep.mubr.bf16.mxu0 0
  %890 = vmatmul.mubr.bf16.gmra.mrb[0].mxu0 %v377
  %v891 = vpop.f32.mrb[0].mxu0
  %v892 = vadd.f32 0.0, %v891
  %v893 = vpop.f32.mrb[0].mxu0
  %v894 = vpop.f32.mrb[0].mxu0
  %v895 = vadd.f32 0.0, %v894
  %v896 = vpop.f32.mrb[0].mxu0
  %897 = vmatprep.mubr.bf16.mxu0 0
  %898 = vmatmul.mubr.bf16.gmra.mrb[0].mxu0 %v380
  %v899 = vpop.f32.mrb[0].mxu0
  %v900 = vadd.f32 0.0, %v899
  %v901 = vpop.f32.mrb[0].mxu0
  %v902 = vpop.f32.mrb[0].mxu0
  %v903 = vadd.f32 0.0, %v902
  %v904 = vpop.f32.mrb[0].mxu0
  %905 = vmatprep.mubr.bf16.mxu0 0
  %906 = vmatmul.mubr.bf16.gmra.mrb[0].mxu0 %v383
  %v907 = vpop.f32.mrb[0].mxu0
  %v908 = vadd.f32 0.0, %v907
  %v909 = vpop.f32.mrb[0].mxu0
  %v910 = vpop.f32.mrb[0].mxu0
  %v911 = vadd.f32 0.0, %v910
  %v912 = vpop.f32.mrb[0].mxu0
  %913 = vmatprep.mubr.bf16.mxu0 0
  %914 = vmatmul.mubr.bf16.gmra.mrb[0].mxu0 %v386
  %v915 = vpop.f32.mrb[0].mxu0
  %v916 = vadd.f32 0.0, %v915
  %v917 = vpop.f32.mrb[0].mxu0
  %v918 = vpop.f32.mrb[0].mxu0
  %v919 = vadd.f32 0.0, %v918
  %v920 = vpop.f32.mrb[0].mxu0
  %921 = vmatprep.mubr.bf16.mxu0 0
  %922 = vmatmul.mubr.bf16.gmra.mrb[0].mxu0 %v389
  %v923 = vpop.f32.mrb[0].mxu0
  %v924 = vadd.f32 0.0, %v923
  %v925 = vpop.f32.mrb[0].mxu0
  %v926 = vpop.f32.mrb[0].mxu0
  %v927 = vadd.f32 0.0, %v926
  %v928 = vpop.f32.mrb[0].mxu0
  %929 = vmatprep.mubr.bf16.mxu0 0
  %930 = vmatmul.mubr.bf16.gmra.mrb[0].mxu0 %v392
  %v931 = vpop.f32.mrb[0].mxu0
  %v932 = vadd.f32 0.0, %v931
  %v933 = vpop.f32.mrb[0].mxu0
  %v934 = vpop.f32.mrb[0].mxu0
  %v935 = vpop.f32.mrb[0].mxu0
  %936 = vdwg.mxu0
  %v937 = vmax.f32 %v436, 0.0
  %v938 = vmax.f32 %v439, 0.0
  %v939 = vmax.f32 %v444, 0.0
  %v940 = vmax.f32 %v447, 0.0
  %v941 = vmax.f32 %v452, 0.0
  %v942 = vmax.f32 %v455, 0.0
  %v943 = vmax.f32 %v460, 0.0
  %v944 = vmax.f32 %v463, 0.0
  %v945 = vmax.f32 %v468, 0.0
  %v946 = vmax.f32 %v471, 0.0
  %v947 = vmax.f32 %v476, 0.0
  %v948 = vmax.f32 %v479, 0.0
  %v949 = vmax.f32 %v484, 0.0
  %v950 = vmax.f32 %v487, 0.0
  %v951 = vmax.f32 %v492, 0.0
  %v952 = vmax.f32 %v495, 0.0
  %v953 = vmax.f32 %v500, 0.0
  %v954 = vmax.f32 %v503, 0.0
  %v955 = vmax.f32 %v508, 0.0
  %v956 = vmax.f32 %v511, 0.0
  %v957 = vmax.f32 %v516, 0.0
  %v958 = vmax.f32 %v519, 0.0
  %v959 = vmax.f32 %v524, 0.0
  %v960 = vmax.f32 %v527, 0.0
  %v961 = vmax.f32 %v532, 0.0
  %v962 = vmax.f32 %v535, 0.0
  %v963 = vmax.f32 %v540, 0.0
  %v964 = vmax.f32 %v543, 0.0
  %v965 = vmax.f32 %v548, 0.0
  %v966 = vmax.f32 %v551, 0.0
  %v967 = vmax.f32 %v556, 0.0
  %v968 = vmax.f32 %v559, 0.0
  %v969 = vmax.f32 %v564, 0.0
  %v970 = vmax.f32 %v567, 0.0
  %v971 = vmax.f32 %v572, 0.0
  %v972 = vmax.f32 %v575, 0.0
  %v973 = vmax.f32 %v580, 0.0
  %v974 = vmax.f32 %v583, 0.0
  %v975 = vmax.f32 %v588, 0.0
  %v976 = vmax.f32 %v591, 0.0
  %v977 = vmax.f32 %v596, 0.0
  %v978 = vmax.f32 %v599, 0.0
  %v979 = vmax.f32 %v604, 0.0
  %v980 = vmax.f32 %v607, 0.0
  %v981 = vmax.f32 %v612, 0.0
  %v982 = vmax.f32 %v615, 0.0
  %v983 = vmax.f32 %v620, 0.0
  %v984 = vmax.f32 %v623, 0.0
  %v985 = vmax.f32 %v628, 0.0
  %v986 = vmax.f32 %v631, 0.0
  %v987 = vmax.f32 %v636, 0.0
  %v988 = vmax.f32 %v639, 0.0
  %v989 = vmax.f32 %v644, 0.0
  %v990 = vmax.f32 %v647, 0.0
  %v991 = vmax.f32 %v652, 0.0
  %v992 = vmax.f32 %v655, 0.0
  %v993 = vmax.f32 %v660, 0.0
  %v994 = vmax.f32 %v663, 0.0
  %v995 = vmax.f32 %v668, 0.0
  %v996 = vmax.f32 %v671, 0.0
  %v997 = vmax.f32 %v676, 0.0
  %v998 = vmax.f32 %v679, 0.0
  %v999 = vmax.f32 %v684, 0.0
  %v1000 = vmax.f32 %v687, 0.0
  %v1001 = vmax.f32 %v692, 0.0
  %v1002 = vmax.f32 %v695, 0.0
  %v1003 = vmax.f32 %v700, 0.0
  %v1004 = vmax.f32 %v703, 0.0
  %v1005 = vmax.f32 %v708, 0.0
  %v1006 = vmax.f32 %v711, 0.0
  %v1007 = vmax.f32 %v716, 0.0
  %v1008 = vmax.f32 %v719, 0.0
  %v1009 = vmax.f32 %v724, 0.0
  %v1010 = vmax.f32 %v727, 0.0
  %v1011 = vmax.f32 %v732, 0.0
  %v1012 = vmax.f32 %v735, 0.0
  %v1013 = vmax.f32 %v740, 0.0
  %v1014 = vmax.f32 %v743, 0.0
  %v1015 = vmax.f32 %v748, 0.0
  %v1016 = vmax.f32 %v751, 0.0
  %v1017 = vmax.f32 %v756, 0.0
  %v1018 = vmax.f32 %v759, 0.0
  %v1019 = vmax.f32 %v764, 0.0
  %v1020 = vmax.f32 %v767, 0.0
  %v1021 = vmax.f32 %v772, 0.0
  %v1022 = vmax.f32 %v775, 0.0
  %v1023 = vmax.f32 %v780, 0.0
  %v1024 = vmax.f32 %v783, 0.0
  %v1025 = vmax.f32 %v788, 0.0
  %v1026 = vmax.f32 %v791, 0.0
  %v1027 = vmax.f32 %v796, 0.0
  %v1028 = vmax.f32 %v799, 0.0
  %v1029 = vmax.f32 %v804, 0.0
  %v1030 = vmax.f32 %v807, 0.0
  %v1031 = vmax.f32 %v812, 0.0
  %v1032 = vmax.f32 %v815, 0.0
  %v1033 = vmax.f32 %v820, 0.0
  %v1034 = vmax.f32 %v823, 0.0
  %v1035 = vmax.f32 %v828, 0.0
  %v1036 = vmax.f32 %v831, 0.0
  %v1037 = vmax.f32 %v836, 0.0
  %v1038 = vmax.f32 %v839, 0.0
  %v1039 = vmax.f32 %v844, 0.0
  %v1040 = vmax.f32 %v847, 0.0
  %v1041 = vmax.f32 %v852, 0.0
  %v1042 = vmax.f32 %v855, 0.0
  %v1043 = vmax.f32 %v860, 0.0
  %v1044 = vmax.f32 %v863, 0.0
  %v1045 = vmax.f32 %v868, 0.0
  %v1046 = vmax.f32 %v871, 0.0
  %v1047 = vmax.f32 %v876, 0.0
  %v1048 = vmax.f32 %v879, 0.0
  %v1049 = vmax.f32 %v884, 0.0
  %v1050 = vmax.f32 %v887, 0.0
  %v1051 = vmax.f32 %v892, 0.0
  %v1052 = vmax.f32 %v895, 0.0
  %v1053 = vmax.f32 %v900, 0.0
  %v1054 = vmax.f32 %v903, 0.0
  %v1055 = vmax.f32 %v908, 0.0
  %v1056 = vmax.f32 %v911, 0.0
  %v1057 = vmax.f32 %v916, 0.0
  %v1058 = vmax.f32 %v919, 0.0
  %v1059 = vmax.f32 %v924, 0.0
  %v1060 = vmax.f32 %v927, 0.0
  %v1061 = vmax.f32 %v932, 0.0
  %v1062 = vpack.c.bf16 %v938, %v937
  %v1063 = vpack.c.bf16 %v940, %v939
  %v1064 = vpack.c.bf16 %v942, %v941
  %v1065 = vpack.c.bf16 %v944, %v943
  %v1066 = vpack.c.bf16 %v946, %v945
  %v1067 = vpack.c.bf16 %v948, %v947
  %v1068 = vpack.c.bf16 %v950, %v949
  %v1069 = vpack.c.bf16 %v952, %v951
  %v1070 = vpack.c.bf16 %v954, %v953
  %v1071 = vpack.c.bf16 %v956, %v955
  %v1072 = vpack.c.bf16 %v958, %v957
  %v1073 = vpack.c.bf16 %v960, %v959
  %v1074 = vpack.c.bf16 %v962, %v961
  %v1075 = vpack.c.bf16 %v964, %v963
  %v1076 = vpack.c.bf16 %v966, %v965
  %v1077 = vpack.c.bf16 %v968, %v967
  %v1078 = vpack.c.bf16 %v970, %v969
  %v1079 = vpack.c.bf16 %v972, %v971
  %v1080 = vpack.c.bf16 %v974, %v973
  %v1081 = vpack.c.bf16 %v976, %v975
  %v1082 = vpack.c.bf16 %v978, %v977
  %v1083 = vpack.c.bf16 %v980, %v979
  %v1084 = vpack.c.bf16 %v982, %v981
  %v1085 = vpack.c.bf16 %v984, %v983
  %v1086 = vpack.c.bf16 %v986, %v985
  %v1087 = vpack.c.bf16 %v988, %v987
  %v1088 = vpack.c.bf16 %v990, %v989
  %v1089 = vpack.c.bf16 %v992, %v991
  %v1090 = vpack.c.bf16 %v994, %v993
  %v1091 = vpack.c.bf16 %v996, %v995
  %v1092 = vpack.c.bf16 %v998, %v997
  %v1093 = vpack.c.bf16 %v1000, %v999
  %v1094 = vpack.c.bf16 %v1002, %v1001
  %v1095 = vpack.c.bf16 %v1004, %v1003
  %v1096 = vpack.c.bf16 %v1006, %v1005
  %v1097 = vpack.c.bf16 %v1008, %v1007
  %v1098 = vpack.c.bf16 %v1010, %v1009
  %v1099 = vpack.c.bf16 %v1012, %v1011
  %v1100 = vpack.c.bf16 %v1014, %v1013
  %v1101 = vpack.c.bf16 %v1016, %v1015
  %v1102 = vpack.c.bf16 %v1018, %v1017
  %v1103 = vpack.c.bf16 %v1020, %v1019
  %v1104 = vpack.c.bf16 %v1022, %v1021
  %v1105 = vpack.c.bf16 %v1024, %v1023
  %v1106 = vpack.c.bf16 %v1026, %v1025
  %v1107 = vpack.c.bf16 %v1028, %v1027
  %v1108 = vpack.c.bf16 %v1030, %v1029
  %v1109 = vpack.c.bf16 %v1032, %v1031
  %v1110 = vpack.c.bf16 %v1034, %v1033
  %v1111 = vpack.c.bf16 %v1036, %v1035
  %v1112 = vpack.c.bf16 %v1038, %v1037
  %v1113 = vpack.c.bf16 %v1040, %v1039
  %v1114 = vpack.c.bf16 %v1042, %v1041
  %v1115 = vpack.c.bf16 %v1044, %v1043
  %v1116 = vpack.c.bf16 %v1046, %v1045
  %v1117 = vpack.c.bf16 %v1048, %v1047
  %v1118 = vpack.c.bf16 %v1050, %v1049
  %v1119 = vpack.c.bf16 %v1052, %v1051
  %v1120 = vpack.c.bf16 %v1054, %v1053
  %v1121 = vpack.c.bf16 %v1056, %v1055
  %v1122 = vpack.c.bf16 %v1058, %v1057
  %v1123 = vpack.c.bf16 %v1060, %v1059
  %v1124 = vpack.c.bf16 %v1061, %v1061
  %v1125 = vld [vmem:[%s2] sm:$0xf]
  %v1126 = vld [vmem:[%s2 + $0x4] sm:$0xf]
  %v1127 = vld [vmem:[%s2 + $0x8] sm:$0xf]
  %v1128 = vld [vmem:[%s2 + $0xc] sm:$0xf]
  %v1129 = vld [vmem:[%s2 + $0x10] sm:$0xf]
  %v1130 = vld [vmem:[%s2 + $0x14] sm:$0xf]
  %v1131 = vld [vmem:[%s2 + $0x18] sm:$0xf]
  %v1132 = vld [vmem:[%s2 + $0x1c] sm:$0xf]
  %v1141 = vunpack.c.l.b16 %v1125
  %v1142 = vunpack.c.l.b16 %v1126
  %v1143 = vunpack.c.l.b16 %v1127
  %v1144 = vunpack.c.l.b16 %v1128
  %v1145 = vunpack.c.l.b16 %v1129
  %v1146 = vunpack.c.l.b16 %v1130
  %v1147 = vunpack.c.l.b16 %v1131
  %v1148 = vunpack.c.l.b16 %v1132
  %v1149 = vpack.c.b16 %v1142, %v1141
  %v1150 = vpack.c.b16 %v1144, %v1143
  %v1151 = vpack.c.b16 %v1146, %v1145
  %v1152 = vpack.c.b16 %v1148, %v1147
  %vm1157 = vcmask 523264
  %v1159 = vsel %vm1157, %v1062, 0
  %v1162 = vsel %vm1157, %v1063, 0
  %v1165 = vsel %vm1157, %v1064, 0
  %v1168 = vsel %vm1157, %v1065, 0
  %v1171 = vsel %vm1157, %v1066, 0
  %v1174 = vsel %vm1157, %v1067, 0
  %v1177 = vsel %vm1157, %v1068, 0
  %v1180 = vsel %vm1157, %v1069, 0
  %v1183 = vsel %vm1157, %v1070, 0
  %v1186 = vsel %vm1157, %v1071, 0
  %v1189 = vsel %vm1157, %v1072, 0
  %v1192 = vsel %vm1157, %v1073, 0
  %v1195 = vsel %vm1157, %v1074, 0
  %v1198 = vsel %vm1157, %v1075, 0
  %v1201 = vsel %vm1157, %v1076, 0
  %v1204 = vsel %vm1157, %v1077, 0
  %v1207 = vsel %vm1157, %v1078, 0
  %v1210 = vsel %vm1157, %v1079, 0
  %v1213 = vsel %vm1157, %v1080, 0
  %v1216 = vsel %vm1157, %v1081, 0
  %v1219 = vsel %vm1157, %v1082, 0
  %v1222 = vsel %vm1157, %v1083, 0
  %v1225 = vsel %vm1157, %v1084, 0
  %v1228 = vsel %vm1157, %v1085, 0
  %v1231 = vsel %vm1157, %v1086, 0
  %v1234 = vsel %vm1157, %v1087, 0
  %v1237 = vsel %vm1157, %v1088, 0
  %v1240 = vsel %vm1157, %v1089, 0
  %v1243 = vsel %vm1157, %v1090, 0
  %v1246 = vsel %vm1157, %v1091, 0
  %v1249 = vsel %vm1157, %v1092, 0
  %v1252 = vsel %vm1157, %v1093, 0
  %v1255 = vsel %vm1157, %v1094, 0
  %v1258 = vsel %vm1157, %v1095, 0
  %v1261 = vsel %vm1157, %v1096, 0
  %v1264 = vsel %vm1157, %v1097, 0
  %v1267 = vsel %vm1157, %v1098, 0
  %v1270 = vsel %vm1157, %v1099, 0
  %v1273 = vsel %vm1157, %v1100, 0
  %v1276 = vsel %vm1157, %v1101, 0
  %v1279 = vsel %vm1157, %v1102, 0
  %v1282 = vsel %vm1157, %v1103, 0
  %v1285 = vsel %vm1157, %v1104, 0
  %v1288 = vsel %vm1157, %v1105, 0
  %v1291 = vsel %vm1157, %v1106, 0
  %v1294 = vsel %vm1157, %v1107, 0
  %v1297 = vsel %vm1157, %v1108, 0
  %v1300 = vsel %vm1157, %v1109, 0
  %v1303 = vsel %vm1157, %v1110, 0
  %v1306 = vsel %vm1157, %v1111, 0
  %v1309 = vsel %vm1157, %v1112, 0
  %v1312 = vsel %vm1157, %v1113, 0
  %v1315 = vsel %vm1157, %v1114, 0
  %v1318 = vsel %vm1157, %v1115, 0
  %v1321 = vsel %vm1157, %v1116, 0
  %v1324 = vsel %vm1157, %v1117, 0
  %v1327 = vsel %vm1157, %v1118, 0
  %v1330 = vsel %vm1157, %v1119, 0
  %v1333 = vsel %vm1157, %v1120, 0
  %v1336 = vsel %vm1157, %v1121, 0
  %v1339 = vsel %vm1157, %v1122, 0
  %v1342 = vsel %vm1157, %v1123, 0
  %v1345 = vsel %vm1157, %v1124, 0
  %1347 = vmatprep.subr.bf16.mxu0 0
  %1348 = vmatpush1.bf16.msra.mxu0 %v1149
  %1349 = vmatprep.subr.bf16.mxu0 0
  %1350 = vmatpush1.bf16.msra.mxu0 %v1150
  %1351 = vmatprep.subr.bf16.mxu0 0
  %1352 = vmatpush1.bf16.msra.mxu0 %v1151
  %1353 = vmatprep.subr.bf16.mxu0 0
  %1354 = vmatpush1.bf16.msra.mxu0 %v1152
  %1355 = vmatprep.subr.bf16.mxu0 0
  %1356 = vmatpush1.bf16.msra.mxu0 0
  %1357 = vmatprep.subr.bf16.mxu0 0
  %1358 = vmatpush1.bf16.msra.mxu0 0
  %1359 = vmatprep.subr.bf16.mxu0 0
  %1360 = vmatpush1.bf16.msra.mxu0 0
  %1361 = vmatprep.subr.bf16.mxu0 0
  %1362 = vmatpush1.bf16.msra.mxu0 0
  %1363 = vmatprep.subr.bf16.mxu0 0
  %1364 = vmatpush1.bf16.msra.mxu0 0
  %1365 = vmatprep.subr.bf16.mxu0 0
  %1366 = vmatpush1.bf16.msra.mxu0 0
  %1367 = vmatprep.subr.bf16.mxu0 0
  %1368 = vmatpush1.bf16.msra.mxu0 0
  %1369 = vmatprep.subr.bf16.mxu0 0
  %1370 = vmatpush1.bf16.msra.mxu0 0
  %1371 = vmatprep.subr.bf16.mxu0 0
  %1372 = vmatpush1.bf16.msra.mxu0 0
  %1373 = vmatprep.subr.bf16.mxu0 0
  %1374 = vmatpush1.bf16.msra.mxu0 0
  %1375 = vmatprep.subr.bf16.mxu0 0
  %1376 = vmatpush1.bf16.msra.mxu0 0
  %1377 = vmatprep.subr.bf16.mxu0 0
  %1378 = vmatpush1.bf16.msra.mxu0 0
  %1379 = vmatprep.mubr.bf16.mxu0 0
  %1380 = vmatmul.mubr.bf16.gmra.mrb[0].mxu0 %v1159
  %v1381 = vpop.f32.mrb[0].mxu0
  %v1382 = vadd.f32 0.0, %v1381
  %v1383 = vpop.f32.mrb[0].mxu0
  %v1384 = vpop.f32.mrb[0].mxu0
  %v1385 = vadd.f32 0.0, %v1384
  %v1386 = vpop.f32.mrb[0].mxu0
  %1387 = vmatprep.mubr.bf16.mxu0 0
  %1388 = vmatmul.mubr.bf16.gmra.mrb[0].mxu0 %v1162
  %v1389 = vpop.f32.mrb[0].mxu0
  %v1390 = vadd.f32 0.0, %v1389
  %v1391 = vpop.f32.mrb[0].mxu0
  %v1392 = vpop.f32.mrb[0].mxu0
  %v1393 = vadd.f32 0.0, %v1392
  %v1394 = vpop.f32.mrb[0].mxu0
  %1395 = vmatprep.mubr.bf16.mxu0 0
  %1396 = vmatmul.mubr.bf16.gmra.mrb[0].mxu0 %v1165
  %v1397 = vpop.f32.mrb[0].mxu0
  %v1398 = vadd.f32 0.0, %v1397
  %v1399 = vpop.f32.mrb[0].mxu0
  %v1400 = vpop.f32.mrb[0].mxu0
  %v1401 = vadd.f32 0.0, %v1400
  %v1402 = vpop.f32.mrb[0].mxu0
  %1403 = vmatprep.mubr.bf16.mxu0 0
  %1404 = vmatmul.mubr.bf16.gmra.mrb[0].mxu0 %v1168
  %v1405 = vpop.f32.mrb[0].mxu0
  %v1406 = vadd.f32 0.0, %v1405
  %v1407 = vpop.f32.mrb[0].mxu0
  %v1408 = vpop.f32.mrb[0].mxu0
  %v1409 = vadd.f32 0.0, %v1408
  %v1410 = vpop.f32.mrb[0].mxu0
  %1411 = vmatprep.mubr.bf16.mxu0 0
  %1412 = vmatmul.mubr.bf16.gmra.mrb[0].mxu0 %v1171
  %v1413 = vpop.f32.mrb[0].mxu0
  %v1414 = vadd.f32 0.0, %v1413
  %v1415 = vpop.f32.mrb[0].mxu0
  %v1416 = vpop.f32.mrb[0].mxu0
  %v1417 = vadd.f32 0.0, %v1416
  %v1418 = vpop.f32.mrb[0].mxu0
  %1419 = vmatprep.mubr.bf16.mxu0 0
  %1420 = vmatmul.mubr.bf16.gmra.mrb[0].mxu0 %v1174
  %v1421 = vpop.f32.mrb[0].mxu0
  %v1422 = vadd.f32 0.0, %v1421
  %v1423 = vpop.f32.mrb[0].mxu0
  %v1424 = vpop.f32.mrb[0].mxu0
  %v1425 = vadd.f32 0.0, %v1424
  %v1426 = vpop.f32.mrb[0].mxu0
  %1427 = vmatprep.mubr.bf16.mxu0 0
  %1428 = vmatmul.mubr.bf16.gmra.mrb[0].mxu0 %v1177
  %v1429 = vpop.f32.mrb[0].mxu0
  %v1430 = vadd.f32 0.0, %v1429
  %v1431 = vpop.f32.mrb[0].mxu0
  %v1432 = vpop.f32.mrb[0].mxu0
  %v1433 = vadd.f32 0.0, %v1432
  %v1434 = vpop.f32.mrb[0].mxu0
  %1435 = vmatprep.mubr.bf16.mxu0 0
  %1436 = vmatmul.mubr.bf16.gmra.mrb[0].mxu0 %v1180
  %v1437 = vpop.f32.mrb[0].mxu0
  %v1438 = vadd.f32 0.0, %v1437
  %v1439 = vpop.f32.mrb[0].mxu0
  %v1440 = vpop.f32.mrb[0].mxu0
  %v1441 = vadd.f32 0.0, %v1440
  %v1442 = vpop.f32.mrb[0].mxu0
  %1443 = vmatprep.mubr.bf16.mxu0 0
  %1444 = vmatmul.mubr.bf16.gmra.mrb[0].mxu0 %v1183
  %v1445 = vpop.f32.mrb[0].mxu0
  %v1446 = vadd.f32 0.0, %v1445
  %v1447 = vpop.f32.mrb[0].mxu0
  %v1448 = vpop.f32.mrb[0].mxu0
  %v1449 = vadd.f32 0.0, %v1448
  %v1450 = vpop.f32.mrb[0].mxu0
  %1451 = vmatprep.mubr.bf16.mxu0 0
  %1452 = vmatmul.mubr.bf16.gmra.mrb[0].mxu0 %v1186
  %v1453 = vpop.f32.mrb[0].mxu0
  %v1454 = vadd.f32 0.0, %v1453
  %v1455 = vpop.f32.mrb[0].mxu0
  %v1456 = vpop.f32.mrb[0].mxu0
  %v1457 = vadd.f32 0.0, %v1456
  %v1458 = vpop.f32.mrb[0].mxu0
  %1459 = vmatprep.mubr.bf16.mxu0 0
  %1460 = vmatmul.mubr.bf16.gmra.mrb[0].mxu0 %v1189
  %v1461 = vpop.f32.mrb[0].mxu0
  %v1462 = vadd.f32 0.0, %v1461
  %v1463 = vpop.f32.mrb[0].mxu0
  %v1464 = vpop.f32.mrb[0].mxu0
  %v1465 = vadd.f32 0.0, %v1464
  %v1466 = vpop.f32.mrb[0].mxu0
  %1467 = vmatprep.mubr.bf16.mxu0 0
  %1468 = vmatmul.mubr.bf16.gmra.mrb[0].mxu0 %v1192
  %v1469 = vpop.f32.mrb[0].mxu0
  %v1470 = vadd.f32 0.0, %v1469
  %v1471 = vpop.f32.mrb[0].mxu0
  %v1472 = vpop.f32.mrb[0].mxu0
  %v1473 = vadd.f32 0.0, %v1472
  %v1474 = vpop.f32.mrb[0].mxu0
  %1475 = vmatprep.mubr.bf16.mxu0 0
  %1476 = vmatmul.mubr.bf16.gmra.mrb[0].mxu0 %v1195
  %v1477 = vpop.f32.mrb[0].mxu0
  %v1478 = vadd.f32 0.0, %v1477
  %v1479 = vpop.f32.mrb[0].mxu0
  %v1480 = vpop.f32.mrb[0].mxu0
  %v1481 = vadd.f32 0.0, %v1480
  %v1482 = vpop.f32.mrb[0].mxu0
  %1483 = vmatprep.mubr.bf16.mxu0 0
  %1484 = vmatmul.mubr.bf16.gmra.mrb[0].mxu0 %v1198
  %v1485 = vpop.f32.mrb[0].mxu0
  %v1486 = vadd.f32 0.0, %v1485
  %v1487 = vpop.f32.mrb[0].mxu0
  %v1488 = vpop.f32.mrb[0].mxu0
  %v1489 = vadd.f32 0.0, %v1488
  %v1490 = vpop.f32.mrb[0].mxu0
  %1491 = vmatprep.mubr.bf16.mxu0 0
  %1492 = vmatmul.mubr.bf16.gmra.mrb[0].mxu0 %v1201
  %v1493 = vpop.f32.mrb[0].mxu0
  %v1494 = vadd.f32 0.0, %v1493
  %v1495 = vpop.f32.mrb[0].mxu0
  %v1496 = vpop.f32.mrb[0].mxu0
  %v1497 = vadd.f32 0.0, %v1496
  %v1498 = vpop.f32.mrb[0].mxu0
  %1499 = vmatprep.mubr.bf16.mxu0 0
  %1500 = vmatmul.mubr.bf16.gmra.mrb[0].mxu0 %v1204
  %v1501 = vpop.f32.mrb[0].mxu0
  %v1502 = vadd.f32 0.0, %v1501
  %v1503 = vpop.f32.mrb[0].mxu0
  %v1504 = vpop.f32.mrb[0].mxu0
  %v1505 = vadd.f32 0.0, %v1504
  %v1506 = vpop.f32.mrb[0].mxu0
  %1507 = vmatprep.mubr.bf16.mxu0 0
  %1508 = vmatmul.mubr.bf16.gmra.mrb[0].mxu0 %v1207
  %v1509 = vpop.f32.mrb[0].mxu0
  %v1510 = vadd.f32 0.0, %v1509
  %v1511 = vpop.f32.mrb[0].mxu0
  %v1512 = vpop.f32.mrb[0].mxu0
  %v1513 = vadd.f32 0.0, %v1512
  %v1514 = vpop.f32.mrb[0].mxu0
  %1515 = vmatprep.mubr.bf16.mxu0 0
  %1516 = vmatmul.mubr.bf16.gmra.mrb[0].mxu0 %v1210
  %v1517 = vpop.f32.mrb[0].mxu0
  %v1518 = vadd.f32 0.0, %v1517
  %v1519 = vpop.f32.mrb[0].mxu0
  %v1520 = vpop.f32.mrb[0].mxu0
  %v1521 = vadd.f32 0.0, %v1520
  %v1522 = vpop.f32.mrb[0].mxu0
  %1523 = vmatprep.mubr.bf16.mxu0 0
  %1524 = vmatmul.mubr.bf16.gmra.mrb[0].mxu0 %v1213
  %v1525 = vpop.f32.mrb[0].mxu0
  %v1526 = vadd.f32 0.0, %v1525
  %v1527 = vpop.f32.mrb[0].mxu0
  %v1528 = vpop.f32.mrb[0].mxu0
  %v1529 = vadd.f32 0.0, %v1528
  %v1530 = vpop.f32.mrb[0].mxu0
  %1531 = vmatprep.mubr.bf16.mxu0 0
  %1532 = vmatmul.mubr.bf16.gmra.mrb[0].mxu0 %v1216
  %v1533 = vpop.f32.mrb[0].mxu0
  %v1534 = vadd.f32 0.0, %v1533
  %v1535 = vpop.f32.mrb[0].mxu0
  %v1536 = vpop.f32.mrb[0].mxu0
  %v1537 = vadd.f32 0.0, %v1536
  %v1538 = vpop.f32.mrb[0].mxu0
  %1539 = vmatprep.mubr.bf16.mxu0 0
  %1540 = vmatmul.mubr.bf16.gmra.mrb[0].mxu0 %v1219
  %v1541 = vpop.f32.mrb[0].mxu0
  %v1542 = vadd.f32 0.0, %v1541
  %v1543 = vpop.f32.mrb[0].mxu0
  %v1544 = vpop.f32.mrb[0].mxu0
  %v1545 = vadd.f32 0.0, %v1544
  %v1546 = vpop.f32.mrb[0].mxu0
  %1547 = vmatprep.mubr.bf16.mxu0 0
  %1548 = vmatmul.mubr.bf16.gmra.mrb[0].mxu0 %v1222
  %v1549 = vpop.f32.mrb[0].mxu0
  %v1550 = vadd.f32 0.0, %v1549
  %v1551 = vpop.f32.mrb[0].mxu0
  %v1552 = vpop.f32.mrb[0].mxu0
  %v1553 = vadd.f32 0.0, %v1552
  %v1554 = vpop.f32.mrb[0].mxu0
  %1555 = vmatprep.mubr.bf16.mxu0 0
  %1556 = vmatmul.mubr.bf16.gmra.mrb[0].mxu0 %v1225
  %v1557 = vpop.f32.mrb[0].mxu0
  %v1558 = vadd.f32 0.0, %v1557
  %v1559 = vpop.f32.mrb[0].mxu0
  %v1560 = vpop.f32.mrb[0].mxu0
  %v1561 = vadd.f32 0.0, %v1560
  %v1562 = vpop.f32.mrb[0].mxu0
  %1563 = vmatprep.mubr.bf16.mxu0 0
  %1564 = vmatmul.mubr.bf16.gmra.mrb[0].mxu0 %v1228
  %v1565 = vpop.f32.mrb[0].mxu0
  %v1566 = vadd.f32 0.0, %v1565
  %v1567 = vpop.f32.mrb[0].mxu0
  %v1568 = vpop.f32.mrb[0].mxu0
  %v1569 = vadd.f32 0.0, %v1568
  %v1570 = vpop.f32.mrb[0].mxu0
  %1571 = vmatprep.mubr.bf16.mxu0 0
  %1572 = vmatmul.mubr.bf16.gmra.mrb[0].mxu0 %v1231
  %v1573 = vpop.f32.mrb[0].mxu0
  %v1574 = vadd.f32 0.0, %v1573
  %v1575 = vpop.f32.mrb[0].mxu0
  %v1576 = vpop.f32.mrb[0].mxu0
  %v1577 = vadd.f32 0.0, %v1576
  %v1578 = vpop.f32.mrb[0].mxu0
  %1579 = vmatprep.mubr.bf16.mxu0 0
  %1580 = vmatmul.mubr.bf16.gmra.mrb[0].mxu0 %v1234
  %v1581 = vpop.f32.mrb[0].mxu0
  %v1582 = vadd.f32 0.0, %v1581
  %v1583 = vpop.f32.mrb[0].mxu0
  %v1584 = vpop.f32.mrb[0].mxu0
  %v1585 = vadd.f32 0.0, %v1584
  %v1586 = vpop.f32.mrb[0].mxu0
  %1587 = vmatprep.mubr.bf16.mxu0 0
  %1588 = vmatmul.mubr.bf16.gmra.mrb[0].mxu0 %v1237
  %v1589 = vpop.f32.mrb[0].mxu0
  %v1590 = vadd.f32 0.0, %v1589
  %v1591 = vpop.f32.mrb[0].mxu0
  %v1592 = vpop.f32.mrb[0].mxu0
  %v1593 = vadd.f32 0.0, %v1592
  %v1594 = vpop.f32.mrb[0].mxu0
  %1595 = vmatprep.mubr.bf16.mxu0 0
  %1596 = vmatmul.mubr.bf16.gmra.mrb[0].mxu0 %v1240
  %v1597 = vpop.f32.mrb[0].mxu0
  %v1598 = vadd.f32 0.0, %v1597
  %v1599 = vpop.f32.mrb[0].mxu0
  %v1600 = vpop.f32.mrb[0].mxu0
  %v1601 = vadd.f32 0.0, %v1600
  %v1602 = vpop.f32.mrb[0].mxu0
  %1603 = vmatprep.mubr.bf16.mxu0 0
  %1604 = vmatmul.mubr.bf16.gmra.mrb[0].mxu0 %v1243
  %v1605 = vpop.f32.mrb[0].mxu0
  %v1606 = vadd.f32 0.0, %v1605
  %v1607 = vpop.f32.mrb[0].mxu0
  %v1608 = vpop.f32.mrb[0].mxu0
  %v1609 = vadd.f32 0.0, %v1608
  %v1610 = vpop.f32.mrb[0].mxu0
  %1611 = vmatprep.mubr.bf16.mxu0 0
  %1612 = vmatmul.mubr.bf16.gmra.mrb[0].mxu0 %v1246
  %v1613 = vpop.f32.mrb[0].mxu0
  %v1614 = vadd.f32 0.0, %v1613
  %v1615 = vpop.f32.mrb[0].mxu0
  %v1616 = vpop.f32.mrb[0].mxu0
  %v1617 = vadd.f32 0.0, %v1616
  %v1618 = vpop.f32.mrb[0].mxu0
  %1619 = vmatprep.mubr.bf16.mxu0 0
  %1620 = vmatmul.mubr.bf16.gmra.mrb[0].mxu0 %v1249
  %v1621 = vpop.f32.mrb[0].mxu0
  %v1622 = vadd.f32 0.0, %v1621
  %v1623 = vpop.f32.mrb[0].mxu0
  %v1624 = vpop.f32.mrb[0].mxu0
  %v1625 = vadd.f32 0.0, %v1624
  %v1626 = vpop.f32.mrb[0].mxu0
  %1627 = vmatprep.mubr.bf16.mxu0 0
  %1628 = vmatmul.mubr.bf16.gmra.mrb[0].mxu0 %v1252
  %v1629 = vpop.f32.mrb[0].mxu0
  %v1630 = vadd.f32 0.0, %v1629
  %v1631 = vpop.f32.mrb[0].mxu0
  %v1632 = vpop.f32.mrb[0].mxu0
  %v1633 = vadd.f32 0.0, %v1632
  %v1634 = vpop.f32.mrb[0].mxu0
  %1635 = vmatprep.mubr.bf16.mxu0 0
  %1636 = vmatmul.mubr.bf16.gmra.mrb[0].mxu0 %v1255
  %v1637 = vpop.f32.mrb[0].mxu0
  %v1638 = vadd.f32 0.0, %v1637
  %v1639 = vpop.f32.mrb[0].mxu0
  %v1640 = vpop.f32.mrb[0].mxu0
  %v1641 = vadd.f32 0.0, %v1640
  %v1642 = vpop.f32.mrb[0].mxu0
  %1643 = vmatprep.mubr.bf16.mxu0 0
  %1644 = vmatmul.mubr.bf16.gmra.mrb[0].mxu0 %v1258
  %v1645 = vpop.f32.mrb[0].mxu0
  %v1646 = vadd.f32 0.0, %v1645
  %v1647 = vpop.f32.mrb[0].mxu0
  %v1648 = vpop.f32.mrb[0].mxu0
  %v1649 = vadd.f32 0.0, %v1648
  %v1650 = vpop.f32.mrb[0].mxu0
  %1651 = vmatprep.mubr.bf16.mxu0 0
  %1652 = vmatmul.mubr.bf16.gmra.mrb[0].mxu0 %v1261
  %v1653 = vpop.f32.mrb[0].mxu0
  %v1654 = vadd.f32 0.0, %v1653
  %v1655 = vpop.f32.mrb[0].mxu0
  %v1656 = vpop.f32.mrb[0].mxu0
  %v1657 = vadd.f32 0.0, %v1656
  %v1658 = vpop.f32.mrb[0].mxu0
  %1659 = vmatprep.mubr.bf16.mxu0 0
  %1660 = vmatmul.mubr.bf16.gmra.mrb[0].mxu0 %v1264
  %v1661 = vpop.f32.mrb[0].mxu0
  %v1662 = vadd.f32 0.0, %v1661
  %v1663 = vpop.f32.mrb[0].mxu0
  %v1664 = vpop.f32.mrb[0].mxu0
  %v1665 = vadd.f32 0.0, %v1664
  %v1666 = vpop.f32.mrb[0].mxu0
  %1667 = vmatprep.mubr.bf16.mxu0 0
  %1668 = vmatmul.mubr.bf16.gmra.mrb[0].mxu0 %v1267
  %v1669 = vpop.f32.mrb[0].mxu0
  %v1670 = vadd.f32 0.0, %v1669
  %v1671 = vpop.f32.mrb[0].mxu0
  %v1672 = vpop.f32.mrb[0].mxu0
  %v1673 = vadd.f32 0.0, %v1672
  %v1674 = vpop.f32.mrb[0].mxu0
  %1675 = vmatprep.mubr.bf16.mxu0 0
  %1676 = vmatmul.mubr.bf16.gmra.mrb[0].mxu0 %v1270
  %v1677 = vpop.f32.mrb[0].mxu0
  %v1678 = vadd.f32 0.0, %v1677
  %v1679 = vpop.f32.mrb[0].mxu0
  %v1680 = vpop.f32.mrb[0].mxu0
  %v1681 = vadd.f32 0.0, %v1680
  %v1682 = vpop.f32.mrb[0].mxu0
  %1683 = vmatprep.mubr.bf16.mxu0 0
  %1684 = vmatmul.mubr.bf16.gmra.mrb[0].mxu0 %v1273
  %v1685 = vpop.f32.mrb[0].mxu0
  %v1686 = vadd.f32 0.0, %v1685
  %v1687 = vpop.f32.mrb[0].mxu0
  %v1688 = vpop.f32.mrb[0].mxu0
  %v1689 = vadd.f32 0.0, %v1688
  %v1690 = vpop.f32.mrb[0].mxu0
  %1691 = vmatprep.mubr.bf16.mxu0 0
  %1692 = vmatmul.mubr.bf16.gmra.mrb[0].mxu0 %v1276
  %v1693 = vpop.f32.mrb[0].mxu0
  %v1694 = vadd.f32 0.0, %v1693
  %v1695 = vpop.f32.mrb[0].mxu0
  %v1696 = vpop.f32.mrb[0].mxu0
  %v1697 = vadd.f32 0.0, %v1696
  %v1698 = vpop.f32.mrb[0].mxu0
  %1699 = vmatprep.mubr.bf16.mxu0 0
  %1700 = vmatmul.mubr.bf16.gmra.mrb[0].mxu0 %v1279
  %v1701 = vpop.f32.mrb[0].mxu0
  %v1702 = vadd.f32 0.0, %v1701
  %v1703 = vpop.f32.mrb[0].mxu0
  %v1704 = vpop.f32.mrb[0].mxu0
  %v1705 = vadd.f32 0.0, %v1704
  %v1706 = vpop.f32.mrb[0].mxu0
  %1707 = vmatprep.mubr.bf16.mxu0 0
  %1708 = vmatmul.mubr.bf16.gmra.mrb[0].mxu0 %v1282
  %v1709 = vpop.f32.mrb[0].mxu0
  %v1710 = vadd.f32 0.0, %v1709
  %v1711 = vpop.f32.mrb[0].mxu0
  %v1712 = vpop.f32.mrb[0].mxu0
  %v1713 = vadd.f32 0.0, %v1712
  %v1714 = vpop.f32.mrb[0].mxu0
  %1715 = vmatprep.mubr.bf16.mxu0 0
  %1716 = vmatmul.mubr.bf16.gmra.mrb[0].mxu0 %v1285
  %v1717 = vpop.f32.mrb[0].mxu0
  %v1718 = vadd.f32 0.0, %v1717
  %v1719 = vpop.f32.mrb[0].mxu0
  %v1720 = vpop.f32.mrb[0].mxu0
  %v1721 = vadd.f32 0.0, %v1720
  %v1722 = vpop.f32.mrb[0].mxu0
  %1723 = vmatprep.mubr.bf16.mxu0 0
  %1724 = vmatmul.mubr.bf16.gmra.mrb[0].mxu0 %v1288
  %v1725 = vpop.f32.mrb[0].mxu0
  %v1726 = vadd.f32 0.0, %v1725
  %v1727 = vpop.f32.mrb[0].mxu0
  %v1728 = vpop.f32.mrb[0].mxu0
  %v1729 = vadd.f32 0.0, %v1728
  %v1730 = vpop.f32.mrb[0].mxu0
  %1731 = vmatprep.mubr.bf16.mxu0 0
  %1732 = vmatmul.mubr.bf16.gmra.mrb[0].mxu0 %v1291
  %v1733 = vpop.f32.mrb[0].mxu0
  %v1734 = vadd.f32 0.0, %v1733
  %v1735 = vpop.f32.mrb[0].mxu0
  %v1736 = vpop.f32.mrb[0].mxu0
  %v1737 = vadd.f32 0.0, %v1736
  %v1738 = vpop.f32.mrb[0].mxu0
  %1739 = vmatprep.mubr.bf16.mxu0 0
  %1740 = vmatmul.mubr.bf16.gmra.mrb[0].mxu0 %v1294
  %v1741 = vpop.f32.mrb[0].mxu0
  %v1742 = vadd.f32 0.0, %v1741
  %v1743 = vpop.f32.mrb[0].mxu0
  %v1744 = vpop.f32.mrb[0].mxu0
  %v1745 = vadd.f32 0.0, %v1744
  %v1746 = vpop.f32.mrb[0].mxu0
  %1747 = vmatprep.mubr.bf16.mxu0 0
  %1748 = vmatmul.mubr.bf16.gmra.mrb[0].mxu0 %v1297
  %v1749 = vpop.f32.mrb[0].mxu0
  %v1750 = vadd.f32 0.0, %v1749
  %v1751 = vpop.f32.mrb[0].mxu0
  %v1752 = vpop.f32.mrb[0].mxu0
  %v1753 = vadd.f32 0.0, %v1752
  %v1754 = vpop.f32.mrb[0].mxu0
  %1755 = vmatprep.mubr.bf16.mxu0 0
  %1756 = vmatmul.mubr.bf16.gmra.mrb[0].mxu0 %v1300
  %v1757 = vpop.f32.mrb[0].mxu0
  %v1758 = vadd.f32 0.0, %v1757
  %v1759 = vpop.f32.mrb[0].mxu0
  %v1760 = vpop.f32.mrb[0].mxu0
  %v1761 = vadd.f32 0.0, %v1760
  %v1762 = vpop.f32.mrb[0].mxu0
  %1763 = vmatprep.mubr.bf16.mxu0 0
  %1764 = vmatmul.mubr.bf16.gmra.mrb[0].mxu0 %v1303
  %v1765 = vpop.f32.mrb[0].mxu0
  %v1766 = vadd.f32 0.0, %v1765
  %v1767 = vpop.f32.mrb[0].mxu0
  %v1768 = vpop.f32.mrb[0].mxu0
  %v1769 = vadd.f32 0.0, %v1768
  %v1770 = vpop.f32.mrb[0].mxu0
  %1771 = vmatprep.mubr.bf16.mxu0 0
  %1772 = vmatmul.mubr.bf16.gmra.mrb[0].mxu0 %v1306
  %v1773 = vpop.f32.mrb[0].mxu0
  %v1774 = vadd.f32 0.0, %v1773
  %v1775 = vpop.f32.mrb[0].mxu0
  %v1776 = vpop.f32.mrb[0].mxu0
  %v1777 = vadd.f32 0.0, %v1776
  %v1778 = vpop.f32.mrb[0].mxu0
  %1779 = vmatprep.mubr.bf16.mxu0 0
  %1780 = vmatmul.mubr.bf16.gmra.mrb[0].mxu0 %v1309
  %v1781 = vpop.f32.mrb[0].mxu0
  %v1782 = vadd.f32 0.0, %v1781
  %v1783 = vpop.f32.mrb[0].mxu0
  %v1784 = vpop.f32.mrb[0].mxu0
  %v1785 = vadd.f32 0.0, %v1784
  %v1786 = vpop.f32.mrb[0].mxu0
  %1787 = vmatprep.mubr.bf16.mxu0 0
  %1788 = vmatmul.mubr.bf16.gmra.mrb[0].mxu0 %v1312
  %v1789 = vpop.f32.mrb[0].mxu0
  %v1790 = vadd.f32 0.0, %v1789
  %v1791 = vpop.f32.mrb[0].mxu0
  %v1792 = vpop.f32.mrb[0].mxu0
  %v1793 = vadd.f32 0.0, %v1792
  %v1794 = vpop.f32.mrb[0].mxu0
  %1795 = vmatprep.mubr.bf16.mxu0 0
  %1796 = vmatmul.mubr.bf16.gmra.mrb[0].mxu0 %v1315
  %v1797 = vpop.f32.mrb[0].mxu0
  %v1798 = vadd.f32 0.0, %v1797
  %v1799 = vpop.f32.mrb[0].mxu0
  %v1800 = vpop.f32.mrb[0].mxu0
  %v1801 = vadd.f32 0.0, %v1800
  %v1802 = vpop.f32.mrb[0].mxu0
  %1803 = vmatprep.mubr.bf16.mxu0 0
  %1804 = vmatmul.mubr.bf16.gmra.mrb[0].mxu0 %v1318
  %v1805 = vpop.f32.mrb[0].mxu0
  %v1806 = vadd.f32 0.0, %v1805
  %v1807 = vpop.f32.mrb[0].mxu0
  %v1808 = vpop.f32.mrb[0].mxu0
  %v1809 = vadd.f32 0.0, %v1808
  %v1810 = vpop.f32.mrb[0].mxu0
  %1811 = vmatprep.mubr.bf16.mxu0 0
  %1812 = vmatmul.mubr.bf16.gmra.mrb[0].mxu0 %v1321
  %v1813 = vpop.f32.mrb[0].mxu0
  %v1814 = vadd.f32 0.0, %v1813
  %v1815 = vpop.f32.mrb[0].mxu0
  %v1816 = vpop.f32.mrb[0].mxu0
  %v1817 = vadd.f32 0.0, %v1816
  %v1818 = vpop.f32.mrb[0].mxu0
  %1819 = vmatprep.mubr.bf16.mxu0 0
  %1820 = vmatmul.mubr.bf16.gmra.mrb[0].mxu0 %v1324
  %v1821 = vpop.f32.mrb[0].mxu0
  %v1822 = vadd.f32 0.0, %v1821
  %v1823 = vpop.f32.mrb[0].mxu0
  %v1824 = vpop.f32.mrb[0].mxu0
  %v1825 = vadd.f32 0.0, %v1824
  %v1826 = vpop.f32.mrb[0].mxu0
  %1827 = vmatprep.mubr.bf16.mxu0 0
  %1828 = vmatmul.mubr.bf16.gmra.mrb[0].mxu0 %v1327
  %v1829 = vpop.f32.mrb[0].mxu0
  %v1830 = vadd.f32 0.0, %v1829
  %v1831 = vpop.f32.mrb[0].mxu0
  %v1832 = vpop.f32.mrb[0].mxu0
  %v1833 = vadd.f32 0.0, %v1832
  %v1834 = vpop.f32.mrb[0].mxu0
  %1835 = vmatprep.mubr.bf16.mxu0 0
  %1836 = vmatmul.mubr.bf16.gmra.mrb[0].mxu0 %v1330
  %v1837 = vpop.f32.mrb[0].mxu0
  %v1838 = vadd.f32 0.0, %v1837
  %v1839 = vpop.f32.mrb[0].mxu0
  %v1840 = vpop.f32.mrb[0].mxu0
  %v1841 = vadd.f32 0.0, %v1840
  %v1842 = vpop.f32.mrb[0].mxu0
  %1843 = vmatprep.mubr.bf16.mxu0 0
  %1844 = vmatmul.mubr.bf16.gmra.mrb[0].mxu0 %v1333
  %v1845 = vpop.f32.mrb[0].mxu0
  %v1846 = vadd.f32 0.0, %v1845
  %v1847 = vpop.f32.mrb[0].mxu0
  %v1848 = vpop.f32.mrb[0].mxu0
  %v1849 = vadd.f32 0.0, %v1848
  %v1850 = vpop.f32.mrb[0].mxu0
  %1851 = vmatprep.mubr.bf16.mxu0 0
  %1852 = vmatmul.mubr.bf16.gmra.mrb[0].mxu0 %v1336
  %v1853 = vpop.f32.mrb[0].mxu0
  %v1854 = vadd.f32 0.0, %v1853
  %v1855 = vpop.f32.mrb[0].mxu0
  %v1856 = vpop.f32.mrb[0].mxu0
  %v1857 = vadd.f32 0.0, %v1856
  %v1858 = vpop.f32.mrb[0].mxu0
  %1859 = vmatprep.mubr.bf16.mxu0 0
  %1860 = vmatmul.mubr.bf16.gmra.mrb[0].mxu0 %v1339
  %v1861 = vpop.f32.mrb[0].mxu0
  %v1862 = vadd.f32 0.0, %v1861
  %v1863 = vpop.f32.mrb[0].mxu0
  %v1864 = vpop.f32.mrb[0].mxu0
  %v1865 = vadd.f32 0.0, %v1864
  %v1866 = vpop.f32.mrb[0].mxu0
  %1867 = vmatprep.mubr.bf16.mxu0 0
  %1868 = vmatmul.mubr.bf16.gmra.mrb[0].mxu0 %v1342
  %v1869 = vpop.f32.mrb[0].mxu0
  %v1870 = vadd.f32 0.0, %v1869
  %v1871 = vpop.f32.mrb[0].mxu0
  %v1872 = vpop.f32.mrb[0].mxu0
  %v1873 = vadd.f32 0.0, %v1872
  %v1874 = vpop.f32.mrb[0].mxu0
  %1875 = vmatprep.mubr.bf16.mxu0 0
  %1876 = vmatmul.mubr.bf16.gmra.mrb[0].mxu0 %v1345
  %v1877 = vpop.f32.mrb[0].mxu0
  %v1878 = vadd.f32 0.0, %v1877
  %v1879 = vpop.f32.mrb[0].mxu0
  %v1880 = vpop.f32.mrb[0].mxu0
  %v1881 = vpop.f32.mrb[0].mxu0
  %1882 = vdwg.mxu0
  %vm1883 = vcmask 130048
  %1884 = vst.msk [vmem:[%s3] sm:$0xff] %vm1883, %v1382
  %1885 = vst.msk [vmem:[%s3 + $0x8] sm:$0xff] %vm1883, %v1385
  %1886 = vst.msk [vmem:[%s3 + $0x10] sm:$0xff] %vm1883, %v1390
  %1887 = vst.msk [vmem:[%s3 + $0x18] sm:$0xff] %vm1883, %v1393
  %1888 = vst.msk [vmem:[%s3 + $0x20] sm:$0xff] %vm1883, %v1398
  %1889 = vst.msk [vmem:[%s3 + $0x28] sm:$0xff] %vm1883, %v1401
  %1890 = vst.msk [vmem:[%s3 + $0x30] sm:$0xff] %vm1883, %v1406
  %1891 = vst.msk [vmem:[%s3 + $0x38] sm:$0xff] %vm1883, %v1409
  %1892 = vst.msk [vmem:[%s3 + $0x40] sm:$0xff] %vm1883, %v1414
  %1893 = vst.msk [vmem:[%s3 + $0x48] sm:$0xff] %vm1883, %v1417
  %1894 = vst.msk [vmem:[%s3 + $0x50] sm:$0xff] %vm1883, %v1422
  %1895 = vst.msk [vmem:[%s3 + $0x58] sm:$0xff] %vm1883, %v1425
  %1896 = vst.msk [vmem:[%s3 + $0x60] sm:$0xff] %vm1883, %v1430
  %1897 = vst.msk [vmem:[%s3 + $0x68] sm:$0xff] %vm1883, %v1433
  %1898 = vst.msk [vmem:[%s3 + $0x70] sm:$0xff] %vm1883, %v1438
  %1899 = vst.msk [vmem:[%s3 + $0x78] sm:$0xff] %vm1883, %v1441
  %1900 = vst.msk [vmem:[%s3 + $0x80] sm:$0xff] %vm1883, %v1446
  %1901 = vst.msk [vmem:[%s3 + $0x88] sm:$0xff] %vm1883, %v1449
  %1902 = vst.msk [vmem:[%s3 + $0x90] sm:$0xff] %vm1883, %v1454
  %1903 = vst.msk [vmem:[%s3 + $0x98] sm:$0xff] %vm1883, %v1457
  %1904 = vst.msk [vmem:[%s3 + $0xa0] sm:$0xff] %vm1883, %v1462
  %1905 = vst.msk [vmem:[%s3 + $0xa8] sm:$0xff] %vm1883, %v1465
  %1906 = vst.msk [vmem:[%s3 + $0xb0] sm:$0xff] %vm1883, %v1470
  %1907 = vst.msk [vmem:[%s3 + $0xb8] sm:$0xff] %vm1883, %v1473
  %1908 = vst.msk [vmem:[%s3 + $0xc0] sm:$0xff] %vm1883, %v1478
  %1909 = vst.msk [vmem:[%s3 + $0xc8] sm:$0xff] %vm1883, %v1481
  %1910 = vst.msk [vmem:[%s3 + $0xd0] sm:$0xff] %vm1883, %v1486
  %1911 = vst.msk [vmem:[%s3 + $0xd8] sm:$0xff] %vm1883, %v1489
  %1912 = vst.msk [vmem:[%s3 + $0xe0] sm:$0xff] %vm1883, %v1494
  %1913 = vst.msk [vmem:[%s3 + $0xe8] sm:$0xff] %vm1883, %v1497
  %1914 = vst.msk [vmem:[%s3 + $0xf0] sm:$0xff] %vm1883, %v1502
  %1915 = vst.msk [vmem:[%s3 + $0xf8] sm:$0xff] %vm1883, %v1505
  %1916 = vst.msk [vmem:[%s3 + $0x100] sm:$0xff] %vm1883, %v1510
  %1917 = vst.msk [vmem:[%s3 + $0x108] sm:$0xff] %vm1883, %v1513
  %1918 = vst.msk [vmem:[%s3 + $0x110] sm:$0xff] %vm1883, %v1518
  %1919 = vst.msk [vmem:[%s3 + $0x118] sm:$0xff] %vm1883, %v1521
  %1920 = vst.msk [vmem:[%s3 + $0x120] sm:$0xff] %vm1883, %v1526
  %1921 = vst.msk [vmem:[%s3 + $0x128] sm:$0xff] %vm1883, %v1529
  %1922 = vst.msk [vmem:[%s3 + $0x130] sm:$0xff] %vm1883, %v1534
  %1923 = vst.msk [vmem:[%s3 + $0x138] sm:$0xff] %vm1883, %v1537
  %1924 = vst.msk [vmem:[%s3 + $0x140] sm:$0xff] %vm1883, %v1542
  %1925 = vst.msk [vmem:[%s3 + $0x148] sm:$0xff] %vm1883, %v1545
  %1926 = vst.msk [vmem:[%s3 + $0x150] sm:$0xff] %vm1883, %v1550
  %1927 = vst.msk [vmem:[%s3 + $0x158] sm:$0xff] %vm1883, %v1553
  %1928 = vst.msk [vmem:[%s3 + $0x160] sm:$0xff] %vm1883, %v1558
  %1929 = vst.msk [vmem:[%s3 + $0x168] sm:$0xff] %vm1883, %v1561
  %1930 = vst.msk [vmem:[%s3 + $0x170] sm:$0xff] %vm1883, %v1566
  %1931 = vst.msk [vmem:[%s3 + $0x178] sm:$0xff] %vm1883, %v1569
  %1932 = vst.msk [vmem:[%s3 + $0x180] sm:$0xff] %vm1883, %v1574
  %1933 = vst.msk [vmem:[%s3 + $0x188] sm:$0xff] %vm1883, %v1577
  %1934 = vst.msk [vmem:[%s3 + $0x190] sm:$0xff] %vm1883, %v1582
  %1935 = vst.msk [vmem:[%s3 + $0x198] sm:$0xff] %vm1883, %v1585
  %1936 = vst.msk [vmem:[%s3 + $0x1a0] sm:$0xff] %vm1883, %v1590
  %1937 = vst.msk [vmem:[%s3 + $0x1a8] sm:$0xff] %vm1883, %v1593
  %1938 = vst.msk [vmem:[%s3 + $0x1b0] sm:$0xff] %vm1883, %v1598
  %1939 = vst.msk [vmem:[%s3 + $0x1b8] sm:$0xff] %vm1883, %v1601
  %1940 = vst.msk [vmem:[%s3 + $0x1c0] sm:$0xff] %vm1883, %v1606
  %1941 = vst.msk [vmem:[%s3 + $0x1c8] sm:$0xff] %vm1883, %v1609
  %1942 = vst.msk [vmem:[%s3 + $0x1d0] sm:$0xff] %vm1883, %v1614
  %1943 = vst.msk [vmem:[%s3 + $0x1d8] sm:$0xff] %vm1883, %v1617
  %1944 = vst.msk [vmem:[%s3 + $0x1e0] sm:$0xff] %vm1883, %v1622
  %1945 = vst.msk [vmem:[%s3 + $0x1e8] sm:$0xff] %vm1883, %v1625
  %1946 = vst.msk [vmem:[%s3 + $0x1f0] sm:$0xff] %vm1883, %v1630
  %1947 = vst.msk [vmem:[%s3 + $0x1f8] sm:$0xff] %vm1883, %v1633
  %1948 = vst.msk [vmem:[%s3 + $0x200] sm:$0xff] %vm1883, %v1638
  %1949 = vst.msk [vmem:[%s3 + $0x208] sm:$0xff] %vm1883, %v1641
  %1950 = vst.msk [vmem:[%s3 + $0x210] sm:$0xff] %vm1883, %v1646
  %1951 = vst.msk [vmem:[%s3 + $0x218] sm:$0xff] %vm1883, %v1649
  %1952 = vst.msk [vmem:[%s3 + $0x220] sm:$0xff] %vm1883, %v1654
  %1953 = vst.msk [vmem:[%s3 + $0x228] sm:$0xff] %vm1883, %v1657
  %1954 = vst.msk [vmem:[%s3 + $0x230] sm:$0xff] %vm1883, %v1662
  %1955 = vst.msk [vmem:[%s3 + $0x238] sm:$0xff] %vm1883, %v1665
  %1956 = vst.msk [vmem:[%s3 + $0x240] sm:$0xff] %vm1883, %v1670
  %1957 = vst.msk [vmem:[%s3 + $0x248] sm:$0xff] %vm1883, %v1673
  %1958 = vst.msk [vmem:[%s3 + $0x250] sm:$0xff] %vm1883, %v1678
  %1959 = vst.msk [vmem:[%s3 + $0x258] sm:$0xff] %vm1883, %v1681
  %1960 = vst.msk [vmem:[%s3 + $0x260] sm:$0xff] %vm1883, %v1686
  %1961 = vst.msk [vmem:[%s3 + $0x268] sm:$0xff] %vm1883, %v1689
  %1962 = vst.msk [vmem:[%s3 + $0x270] sm:$0xff] %vm1883, %v1694
  %1963 = vst.msk [vmem:[%s3 + $0x278] sm:$0xff] %vm1883, %v1697
  %1964 = vst.msk [vmem:[%s3 + $0x280] sm:$0xff] %vm1883, %v1702
  %1965 = vst.msk [vmem:[%s3 + $0x288] sm:$0xff] %vm1883, %v1705
  %1966 = vst.msk [vmem:[%s3 + $0x290] sm:$0xff] %vm1883, %v1710
  %1967 = vst.msk [vmem:[%s3 + $0x298] sm:$0xff] %vm1883, %v1713
  %1968 = vst.msk [vmem:[%s3 + $0x2a0] sm:$0xff] %vm1883, %v1718
  %1969 = vst.msk [vmem:[%s3 + $0x2a8] sm:$0xff] %vm1883, %v1721
  %1970 = vst.msk [vmem:[%s3 + $0x2b0] sm:$0xff] %vm1883, %v1726
  %1971 = vst.msk [vmem:[%s3 + $0x2b8] sm:$0xff] %vm1883, %v1729
  %1972 = vst.msk [vmem:[%s3 + $0x2c0] sm:$0xff] %vm1883, %v1734
  %1973 = vst.msk [vmem:[%s3 + $0x2c8] sm:$0xff] %vm1883, %v1737
  %1974 = vst.msk [vmem:[%s3 + $0x2d0] sm:$0xff] %vm1883, %v1742
  %1975 = vst.msk [vmem:[%s3 + $0x2d8] sm:$0xff] %vm1883, %v1745
  %1976 = vst.msk [vmem:[%s3 + $0x2e0] sm:$0xff] %vm1883, %v1750
  %1977 = vst.msk [vmem:[%s3 + $0x2e8] sm:$0xff] %vm1883, %v1753
  %1978 = vst.msk [vmem:[%s3 + $0x2f0] sm:$0xff] %vm1883, %v1758
  %1979 = vst.msk [vmem:[%s3 + $0x2f8] sm:$0xff] %vm1883, %v1761
  %1980 = vst.msk [vmem:[%s3 + $0x300] sm:$0xff] %vm1883, %v1766
  %1981 = vst.msk [vmem:[%s3 + $0x308] sm:$0xff] %vm1883, %v1769
  %1982 = vst.msk [vmem:[%s3 + $0x310] sm:$0xff] %vm1883, %v1774
  %1983 = vst.msk [vmem:[%s3 + $0x318] sm:$0xff] %vm1883, %v1777
  %1984 = vst.msk [vmem:[%s3 + $0x320] sm:$0xff] %vm1883, %v1782
  %1985 = vst.msk [vmem:[%s3 + $0x328] sm:$0xff] %vm1883, %v1785
  %1986 = vst.msk [vmem:[%s3 + $0x330] sm:$0xff] %vm1883, %v1790
  %1987 = vst.msk [vmem:[%s3 + $0x338] sm:$0xff] %vm1883, %v1793
  %1988 = vst.msk [vmem:[%s3 + $0x340] sm:$0xff] %vm1883, %v1798
  %1989 = vst.msk [vmem:[%s3 + $0x348] sm:$0xff] %vm1883, %v1801
  %1990 = vst.msk [vmem:[%s3 + $0x350] sm:$0xff] %vm1883, %v1806
  %1991 = vst.msk [vmem:[%s3 + $0x358] sm:$0xff] %vm1883, %v1809
  %1992 = vst.msk [vmem:[%s3 + $0x360] sm:$0xff] %vm1883, %v1814
  %1993 = vst.msk [vmem:[%s3 + $0x368] sm:$0xff] %vm1883, %v1817
  %1994 = vst.msk [vmem:[%s3 + $0x370] sm:$0xff] %vm1883, %v1822
  %1995 = vst.msk [vmem:[%s3 + $0x378] sm:$0xff] %vm1883, %v1825
  %1996 = vst.msk [vmem:[%s3 + $0x380] sm:$0xff] %vm1883, %v1830
  %1997 = vst.msk [vmem:[%s3 + $0x388] sm:$0xff] %vm1883, %v1833
  %1998 = vst.msk [vmem:[%s3 + $0x390] sm:$0xff] %vm1883, %v1838
  %1999 = vst.msk [vmem:[%s3 + $0x398] sm:$0xff] %vm1883, %v1841
  %2000 = vst.msk [vmem:[%s3 + $0x3a0] sm:$0xff] %vm1883, %v1846
  %2001 = vst.msk [vmem:[%s3 + $0x3a8] sm:$0xff] %vm1883, %v1849
  %2002 = vst.msk [vmem:[%s3 + $0x3b0] sm:$0xff] %vm1883, %v1854
  %2003 = vst.msk [vmem:[%s3 + $0x3b8] sm:$0xff] %vm1883, %v1857
  %2004 = vst.msk [vmem:[%s3 + $0x3c0] sm:$0xff] %vm1883, %v1862
  %2005 = vst.msk [vmem:[%s3 + $0x3c8] sm:$0xff] %vm1883, %v1865
  %2006 = vst.msk [vmem:[%s3 + $0x3d0] sm:$0xff] %vm1883, %v1870
  %2007 = vst.msk [vmem:[%s3 + $0x3d8] sm:$0xff] %vm1883, %v1873
  %2008 = vst.msk [vmem:[%s3 + $0x3e0] sm:$0xff] %vm1883, %v1878
  // Predicated region
  $region14: #{tpu_custom_call.1} parent=0 // pred_check
    _
  $region15: #{tpu_custom_call.1} parent=0 // pred_check_branch
    %2010 = sbr.rel (0) target = $region17
  $region16: #{tpu_custom_call.1} parent=0 // pred_region
    _
  $region17: #{tpu_custom_call.1} parent=0 // pred_fallthru
    _
  // Predicated region
  $region18: #{tpu_custom_call.1} parent=0 // pred_check
    _
  $region19: #{tpu_custom_call.1} parent=0 // pred_check_branch
    %2012 = sbr.rel (0) target = $region21
  $region20: #{tpu_custom_call.1} parent=0 // pred_region
    _
  $region21: #{tpu_custom_call.1} parent=0 // pred_fallthru
    _

</llo_original>
